<compile_context>
chip_gen: v7x
topology: tpu7x:2x2x1
jax: 0.10.0
libtpu: 0.0.40
codegen_flags: <defaults>
</compile_context>

<pallas_src>
import functools

import jax
import jax.numpy as jnp
from jax.experimental import pallas as pl
from jax.experimental.pallas import tpu as pltpu

_EPS = 1e-5  # torch.nn.LayerNorm default


def _rnd_lane(c):
    return ((c + 127) // 128) * 128


def _layer_norm(v, gamma, beta, real_c):
    """LayerNorm over the last dim, statistics over the REAL channel count.

    Padded lanes of `v` are exactly zero (zero-padded weights/biases), so the
    full-width sums equal the real-channel sums; divide by real_c only.
    gamma/beta are zero in padded lanes, so padded lanes stay exactly zero.
    """
    inv_c = 1.0 / float(real_c)
    mu = jnp.sum(v, axis=-1, keepdims=True) * inv_c
    ex2 = jnp.sum(v * v, axis=-1, keepdims=True) * inv_c
    var = jnp.maximum(ex2 - mu * mu, 0.0)          # single-pass variance
    return (v - mu) * jax.lax.rsqrt(var + _EPS) * gamma + beta


def _model_kernel(x_ref, *rest, layer_meta):
    """Whole FusedMBConv1dModel forward for ONE batch element.

    x_ref : [1, S, C0]            (real, unpadded channels)
    rest  : 8 param refs per layer (lane-padded), then o_ref [1, S, Cpad_last],
            then hbuf scratch [S + 2P, rnd(C0)] (P = sum of per-layer pads).
    layer_meta: tuple of (k, pad, res_con, c_exp_real, c_out_real).
    """
    o_ref, hbuf = rest[-2], rest[-1]
    params = rest[:-2]

    S = x_ref.shape[1]
    c0 = x_ref.shape[2]
    P = sum(m[1] for m in layer_meta)
    T = hbuf.shape[0]

    # Stage the input into a zero halo frame held in VMEM: rows [P, P+S) and
    # lanes [0, c0) get the data; halo rows and padded lanes stay exactly
    # zero, providing the convs' 'same' zero padding.  (No wrapper jnp.pad.)
    hbuf[...] = jnp.zeros_like(hbuf)
    hbuf[pl.ds(P, S), pl.ds(0, c0)] = x_ref[0].astype(hbuf.dtype)
    h = hbuf[...]                                   # (T, rnd(C0)) f32

    rows, halo = T, P
    for li, (k, pad, res_con, c_exp, c_out) in enumerate(layer_meta):
        (w1_ref, b1_ref, g1_ref, be1_ref,
         w2_ref, b2_ref, g2_ref, be2_ref) = params[8 * li:8 * (li + 1)]

        if li > 0:
            # Re-zero halo rows so they act as this conv's 'same' zero
            # padding.  In-kernel iota mask (replaces HBM mask operands).
            row = jax.lax.broadcasted_iota(jnp.int32, h.shape, 0)
            h = jnp.where((row >= halo) & (row < halo + S), h, 0.0)

        r_out = rows - 2 * pad
        hm = h.astype(w1_ref.dtype)       # bf16 MXU operands if requested

        # expand conv: k accumulated MXU matmuls (no tap lane-concat).
        acc = jnp.dot(hm[0:r_out, :], w1_ref[0],
                      preferred_element_type=jnp.float32)
        for t in range(1, k):
            acc = acc + jnp.dot(hm[t:t + r_out, :], w1_ref[t],
                                preferred_element_type=jnp.float32)
        acc = acc + b1_ref[...]
        hid = _layer_norm(acc, g1_ref[...], be1_ref[...], c_exp)
        # activation: module default is Identity (activ=None).

        # 1x1 project conv == channel matmul.
        y = jnp.dot(hid.astype(w2_ref.dtype), w2_ref[...],
                    preferred_element_type=jnp.float32) + b2_ref[...]
        y = _layer_norm(y, g2_ref[...], be2_ref[...], c_out)
        # Dropout1d(p=0) is the identity in this configuration.
        if res_con:
            y = y + h[pad:pad + r_out, :]   # centre tap == layer input rows
        h, rows, halo = y, r_out, halo - pad

    # After the last layer the frame is exactly the S real rows.
    o_ref[0] = h.astype(o_ref.dtype)


def fused_mbconv1d_model(x, layer_params, layer_configs, pool=False,
                         use_bf16_matmul=True):
    """FusedMBConv1dModel.forward, fully fused into one Pallas kernel.

    x: [B, S, Cin0] -> [B, S, Cout_last] (optional max-pool over S), squeezed.
    """
    B, S, C0 = x.shape
    mm_dtype = jnp.bfloat16 if use_bf16_matmul else jnp.float32

    # ---- static per-layer geometry ---------------------------------------
    metas, pads = [], []
    c_in = C0
    for p, cfg in zip(layer_params, layer_configs):
        k, stride = cfg["kernel_size"], cfg["stride"]
        assert stride == 1, "TODO(synk): stride > 1 not implemented"
        assert k % 2 == 1, "TODO(synk): even kernel_size not implemented"
        assert p["w1"].shape[:2] == (k, c_in)
        pad = (k - 1) // 2
        c_exp, c_out = p["w1"].shape[2], p["w2"].shape[1]
        metas.append((k, pad, c_in == c_out, c_exp, c_out))
        pads.append(pad)
        c_in = c_out
    c_last = c_in
    P = sum(pads)
    T = S + 2 * P                       # halo'd rows per batch element

    # ---- lane-pad parameters to multiples of 128 (zero pad) ---------------
    # Zero padding of w/b/gamma/beta guarantees padded output lanes stay
    # exactly zero through conv, LayerNorm and residual, so no channel mask
    # is ever needed and LN statistics just divide by the real channel count.
    flat_params = []
    c_prev = C0
    for p, cfg in zip(layer_params, layer_configs):
        k = cfg["kernel_size"]
        c_exp, c_out = p["w1"].shape[2], p["w2"].shape[1]
        ci_p, ce_p, co_p = _rnd_lane(c_prev), _rnd_lane(c_exp), _rnd_lane(c_out)

        w1 = jnp.zeros((k, ci_p, ce_p), mm_dtype)
        w1 = w1.at[:, :c_prev, :c_exp].set(p["w1"].astype(mm_dtype))
        w2 = jnp.zeros((ce_p, co_p), mm_dtype)
        w2 = w2.at[:c_exp, :c_out].set(p["w2"].astype(mm_dtype))

        def vpad(v, cp):
            return jnp.zeros((1, cp), jnp.float32).at[:, :v.shape[1]].set(
                v.astype(jnp.float32))

        flat_params += [w1, vpad(p["b1"], ce_p), vpad(p["g1"], ce_p),
                        vpad(p["be1"], ce_p),
                        w2, vpad(p["b2"], co_p), vpad(p["g2"], co_p),
                        vpad(p["be2"], co_p)]
        c_prev = c_out
    c_last_pad = _rnd_lane(c_last)

    kernel = functools.partial(_model_kernel, layer_meta=tuple(metas))

    in_specs = [pl.BlockSpec((1, S, C0), lambda b: (b, 0, 0))]
    for op in flat_params:
        in_specs.append(pl.BlockSpec(op.shape, lambda b, _n=op.ndim: (0,) * _n))

    out_pad = pl.pallas_call(
        kernel,
        out_shape=jax.ShapeDtypeStruct((B, S, c_last_pad), x.dtype),
        grid=(B,),                      # one batch element per grid step
        in_specs=in_specs,
        out_specs=pl.BlockSpec((1, S, c_last_pad), lambda b: (b, 0, 0)),
        scratch_shapes=[pltpu.VMEM((T, _rnd_lane(C0)), jnp.float32)],
        compiler_params=pltpu.CompilerParams(
            dimension_semantics=("parallel",),      # shard batch across TCs
            vmem_limit_bytes=48 * 1024 * 1024),     # fits v7x 64 MiB w/ room
    )(x, *flat_params)

    out = out_pad[..., :c_last]         # drop lane padding (cheap wrapper op)
    if pool:
        out = jnp.max(out, axis=1)
    return jnp.squeeze(out)             # matches the module's .squeeze()


# ---------------------------------------------------------------------------
# Pure-JAX reference (same math, no Pallas) used as a correctness check.
# ---------------------------------------------------------------------------
def _ref_layer(x, p, *, kernel_size, stride=1):
    B, S, Cin = x.shape
    pad = (kernel_size - 1) // 2
    Cout = p["w2"].shape[1]
    xp = jnp.pad(x, ((0, 0), (pad, pad), (0, 0)))
    acc = sum(jnp.einsum("bsc,cd->bsd", xp[:, t:t + S, :], p["w1"][t])
              for t in range(kernel_size)) + p["b1"][0]
    mu = acc.mean(-1, keepdims=True)
    var = ((acc - mu) ** 2).mean(-1, keepdims=True)
    h = (acc - mu) / jnp.sqrt(var + _EPS) * p["g1"][0] + p["be1"][0]
    y = jnp.einsum("bsd,de->bse", h, p["w2"]) + p["b2"][0]
    mu2 = y.mean(-1, keepdims=True)
    var2 = ((y - mu2) ** 2).mean(-1, keepdims=True)
    y = (y - mu2) / jnp.sqrt(var2 + _EPS) * p["g2"][0] + p["be2"][0]
    if Cin == Cout and stride == 1:
        y = y + x
    return y


def _ref_model(x, layer_params, layer_configs, pool=False):
    for p, cfg in zip(layer_params, layer_configs):
        x = _ref_layer(x, p, kernel_size=cfg["kernel_size"],
                       stride=cfg["stride"])
    if pool:
        x = jnp.max(x, axis=1)
    return jnp.squeeze(x)


def init_layer_params(key, in_ch, out_ch, expand, kernel_size):
    exp_ch = in_ch * expand
    ks = jax.random.split(key, 8)
    scale1 = 1.0 / jnp.sqrt(in_ch * kernel_size)
    scale2 = 1.0 / jnp.sqrt(exp_ch)
    return {
        "w1": jax.random.normal(ks[0], (kernel_size, in_ch, exp_ch),
                                jnp.float32) * scale1,
        "b1": jax.random.normal(ks[1], (1, exp_ch), jnp.float32) * scale1,
        "g1": 1.0 + 0.1 * jax.random.normal(ks[2], (1, exp_ch), jnp.float32),
        "be1": 0.1 * jax.random.normal(ks[3], (1, exp_ch), jnp.float32),
        "w2": jax.random.normal(ks[4], (exp_ch, out_ch),
                                jnp.float32) * scale2,
        "b2": jax.random.normal(ks[5], (1, out_ch), jnp.float32) * scale2,
        "g2": 1.0 + 0.1 * jax.random.normal(ks[6], (1, out_ch), jnp.float32),
        "be2": 0.1 * jax.random.normal(ks[7], (1, out_ch), jnp.float32),
    }


if __name__ == "__main__":
    key = jax.random.PRNGKey(0)

    # Two FusedMBConvConfig layers (num_layers field is unused by the module).
    layer_configs = [
        dict(in_channels=4, out_channels=4, kernel_size=3, stride=1, expand=2),
        dict(in_channels=4, out_channels=8, kernel_size=3, stride=1, expand=2),
    ]

    k_x, *k_layers = jax.random.split(key, 1 + len(layer_configs))
    layer_params = [
        init_layer_params(kl, c["in_channels"], c["out_channels"],
                          c["expand"], c["kernel_size"])
        for kl, c in zip(k_layers, layer_configs)
    ]

    B, S, CH = 2, 16, layer_configs[0]["in_channels"]
    x = jax.random.normal(k_x, (B, S, CH), jnp.float32)

    model_f32 = jax.jit(functools.partial(
        fused_mbconv1d_model, layer_configs=layer_configs, pool=False,
        use_bf16_matmul=False))
    model_bf16 = jax.jit(functools.partial(
        fused_mbconv1d_model, layer_configs=layer_configs, pool=False,
        use_bf16_matmul=True))

    out = jax.block_until_ready(model_f32(x, layer_params))
    ref = _ref_model(x, layer_params, layer_configs, pool=False)
    assert out.shape == ref.shape == (B, S, layer_configs[-1]["out_channels"])
    assert jnp.allclose(out, ref, rtol=1e-3, atol=1e-3), float(
        jnp.max(jnp.abs(out - ref)))

    # bf16-MXU default path (recommended on v5e/v6e/v7x); LN stays in f32.
    out_bf16 = jax.block_until_ready(model_bf16(x, layer_params))
    assert jnp.allclose(out_bf16, ref, rtol=1e-1, atol=1e-1)

    print("KERNEL_OK")
</pallas_src>

<mosaic_0001>
module attributes {stable_mosaic.version = 11 : i64} {
  func.func @_model_kernel(%arg0: i32, %arg1: memref<1x16x4xf32, #tpu.memory_space<vmem>>, %arg2: memref<3x128x128xf32, #tpu.memory_space<vmem>>, %arg3: memref<1x128xf32, #tpu.memory_space<vmem>>, %arg4: memref<1x128xf32, #tpu.memory_space<vmem>>, %arg5: memref<1x128xf32, #tpu.memory_space<vmem>>, %arg6: memref<128x128xf32, #tpu.memory_space<vmem>>, %arg7: memref<1x128xf32, #tpu.memory_space<vmem>>, %arg8: memref<1x128xf32, #tpu.memory_space<vmem>>, %arg9: memref<1x128xf32, #tpu.memory_space<vmem>>, %arg10: memref<3x128x128xf32, #tpu.memory_space<vmem>>, %arg11: memref<1x128xf32, #tpu.memory_space<vmem>>, %arg12: memref<1x128xf32, #tpu.memory_space<vmem>>, %arg13: memref<1x128xf32, #tpu.memory_space<vmem>>, %arg14: memref<128x128xf32, #tpu.memory_space<vmem>>, %arg15: memref<1x128xf32, #tpu.memory_space<vmem>>, %arg16: memref<1x128xf32, #tpu.memory_space<vmem>>, %arg17: memref<1x128xf32, #tpu.memory_space<vmem>>, %arg18: memref<1x16x128xf32, #tpu.memory_space<vmem>>, %arg19: memref<20x128xf32, #tpu.memory_space<vmem>>) attributes {dimension_semantics = [#tpu.dimension_semantics<parallel>], iteration_bounds = array<i64: 2>, scalar_prefetch = 0 : i64, scratch_operands = 1 : i64, tpu.core_type = #tpu.core_type<tc>, window_params = [{transform_indices = @transform_0, window_bounds = array<i64: 1, 16, 4>}, {pipeline_mode = #tpu.pipeline_mode<synchronous>, transform_indices = @transform_1, window_bounds = array<i64: 3, 128, 128>}, {pipeline_mode = #tpu.pipeline_mode<synchronous>, transform_indices = @transform_2, window_bounds = array<i64: 1, 128>}, {pipeline_mode = #tpu.pipeline_mode<synchronous>, transform_indices = @transform_3, window_bounds = array<i64: 1, 128>}, {pipeline_mode = #tpu.pipeline_mode<synchronous>, transform_indices = @transform_4, window_bounds = array<i64: 1, 128>}, {pipeline_mode = #tpu.pipeline_mode<synchronous>, transform_indices = @transform_5, window_bounds = array<i64: 128, 128>}, {pipeline_mode = #tpu.pipeline_mode<synchronous>, transform_indices = @transform_6, window_bounds = array<i64: 1, 128>}, {pipeline_mode = #tpu.pipeline_mode<synchronous>, transform_indices = @transform_7, window_bounds = array<i64: 1, 128>}, {pipeline_mode = #tpu.pipeline_mode<synchronous>, transform_indices = @transform_8, window_bounds = array<i64: 1, 128>}, {pipeline_mode = #tpu.pipeline_mode<synchronous>, transform_indices = @transform_9, window_bounds = array<i64: 3, 128, 128>}, {pipeline_mode = #tpu.pipeline_mode<synchronous>, transform_indices = @transform_10, window_bounds = array<i64: 1, 128>}, {pipeline_mode = #tpu.pipeline_mode<synchronous>, transform_indices = @transform_11, window_bounds = array<i64: 1, 128>}, {pipeline_mode = #tpu.pipeline_mode<synchronous>, transform_indices = @transform_12, window_bounds = array<i64: 1, 128>}, {pipeline_mode = #tpu.pipeline_mode<synchronous>, transform_indices = @transform_13, window_bounds = array<i64: 128, 128>}, {pipeline_mode = #tpu.pipeline_mode<synchronous>, transform_indices = @transform_14, window_bounds = array<i64: 1, 128>}, {pipeline_mode = #tpu.pipeline_mode<synchronous>, transform_indices = @transform_15, window_bounds = array<i64: 1, 128>}, {pipeline_mode = #tpu.pipeline_mode<synchronous>, transform_indices = @transform_16, window_bounds = array<i64: 1, 128>}, {transform_indices = @transform_17, window_bounds = array<i64: 1, 16, 128>}]} {
    %cst = arith.constant 0.000000e+00 : f32
    %0 = vector.broadcast %cst : f32 to vector<20x128xf32>
    %c0 = arith.constant 0 : index
    %c0_0 = arith.constant 0 : index
    %1 = vector.load %arg19[%c0, %c0_0] : memref<20x128xf32, #tpu.memory_space<vmem>>, vector<20x128xf32>
    tpu.vector_store %arg19[%c0, %c0_0], %0 {strides = array<i32>} : memref<20x128xf32, #tpu.memory_space<vmem>>, vector<20x128xf32>,
    %c0_1 = arith.constant 0 : index
    %c0_2 = arith.constant 0 : index
    %c0_3 = arith.constant 0 : index
    %2 = vector.load %arg1[%c0_1, %c0_2, %c0_3] : memref<1x16x4xf32, #tpu.memory_space<vmem>>, vector<1x16x4xf32>
    %3 = vector.shape_cast %2 : vector<1x16x4xf32> to vector<16x4xf32>
    %c2 = arith.constant 2 : index
    %c0_4 = arith.constant 0 : index
    %4 = vector.load %arg19[%c2, %c0_4] : memref<20x128xf32, #tpu.memory_space<vmem>>, vector<16x4xf32>
    tpu.vector_store %arg19[%c2, %c0_4], %3 {strides = array<i32>} : memref<20x128xf32, #tpu.memory_space<vmem>>, vector<16x4xf32>,
    %c0_5 = arith.constant 0 : index
    %c0_6 = arith.constant 0 : index
    %5 = vector.load %arg19[%c0_5, %c0_6] : memref<20x128xf32, #tpu.memory_space<vmem>>, vector<20x128xf32>
    %6 = vector.extract_strided_slice %5 {offsets = [0, 0], sizes = [18, 128], strides = [1, 1]} : vector<20x128xf32> to vector<18x128xf32>
    %c0_7 = arith.constant 0 : index
    %c0_8 = arith.constant 0 : index
    %c0_9 = arith.constant 0 : index
    %7 = vector.load %arg2[%c0_7, %c0_8, %c0_9] : memref<3x128x128xf32, #tpu.memory_space<vmem>>, vector<1x128x128xf32>
    %8 = vector.shape_cast %7 : vector<1x128x128xf32> to vector<128x128xf32>
    %cst_10 = arith.constant dense<0.000000e+00> : vector<18x128xf32>
    %9 = tpu.matmul %6, %8, %cst_10 {dimension_numbers = #tpu.dot_dimension_numbers<[1], [0], [0], [1], [0, 0, 1, 1], [], []>} : vector<18x128xf32>, vector<128x128xf32>, vector<18x128xf32> -> vector<18x128xf32>
    %10 = vector.extract_strided_slice %5 {offsets = [1, 0], sizes = [18, 128], strides = [1, 1]} : vector<20x128xf32> to vector<18x128xf32>
    %c1 = arith.constant 1 : index
    %c0_11 = arith.constant 0 : index
    %c0_12 = arith.constant 0 : index
    %11 = vector.load %arg2[%c1, %c0_11, %c0_12] : memref<3x128x128xf32, #tpu.memory_space<vmem>>, vector<1x128x128xf32>
    %12 = vector.shape_cast %11 : vector<1x128x128xf32> to vector<128x128xf32>
    %cst_13 = arith.constant dense<0.000000e+00> : vector<18x128xf32>
    %13 = tpu.matmul %10, %12, %cst_13 {dimension_numbers = #tpu.dot_dimension_numbers<[1], [0], [0], [1], [0, 0, 1, 1], [], []>} : vector<18x128xf32>, vector<128x128xf32>, vector<18x128xf32> -> vector<18x128xf32>
    %14 = arith.addf %9, %13 : vector<18x128xf32>
    %15 = vector.extract_strided_slice %5 {offsets = [2, 0], sizes = [18, 128], strides = [1, 1]} : vector<20x128xf32> to vector<18x128xf32>
    %c2_14 = arith.constant 2 : index
    %c0_15 = arith.constant 0 : index
    %c0_16 = arith.constant 0 : index
    %16 = vector.load %arg2[%c2_14, %c0_15, %c0_16] : memref<3x128x128xf32, #tpu.memory_space<vmem>>, vector<1x128x128xf32>
    %17 = vector.shape_cast %16 : vector<1x128x128xf32> to vector<128x128xf32>
    %cst_17 = arith.constant dense<0.000000e+00> : vector<18x128xf32>
    %18 = tpu.matmul %15, %17, %cst_17 {dimension_numbers = #tpu.dot_dimension_numbers<[1], [0], [0], [1], [0, 0, 1, 1], [], []>} : vector<18x128xf32>, vector<128x128xf32>, vector<18x128xf32> -> vector<18x128xf32>
    %19 = arith.addf %14, %18 : vector<18x128xf32>
    %c0_18 = arith.constant 0 : index
    %c0_19 = arith.constant 0 : index
    %20 = vector.load %arg3[%c0_18, %c0_19] : memref<1x128xf32, #tpu.memory_space<vmem>>, vector<1x128xf32>
    %21 = vector.broadcast %20 : vector<1x128xf32> to vector<18x128xf32>
    %22 = arith.addf %19, %21 : vector<18x128xf32>
    %c0_20 = arith.constant 0 : index
    %c0_21 = arith.constant 0 : index
    %23 = vector.load %arg4[%c0_20, %c0_21] : memref<1x128xf32, #tpu.memory_space<vmem>>, vector<1x128xf32>
    %c0_22 = arith.constant 0 : index
    %c0_23 = arith.constant 0 : index
    %24 = vector.load %arg5[%c0_22, %c0_23] : memref<1x128xf32, #tpu.memory_space<vmem>>, vector<1x128xf32>
    %cst_24 = arith.constant dense<0.000000e+00> : vector<18xf32>
    %25 = vector.multi_reduction <add>, %22, %cst_24 [1] : vector<18x128xf32> to vector<18xf32>
    %26 = vector.shape_cast %25 : vector<18xf32> to vector<18x1xf32>
    %cst_25 = arith.constant 1.250000e-01 : f32
    %27 = vector.broadcast %cst_25 : f32 to vector<18x1xf32>
    %28 = arith.mulf %26, %27 : vector<18x1xf32>
    %29 = arith.mulf %22, %22 : vector<18x128xf32>
    %cst_26 = arith.constant dense<0.000000e+00> : vector<18xf32>
    %30 = vector.multi_reduction <add>, %29, %cst_26 [1] : vector<18x128xf32> to vector<18xf32>
    %31 = vector.shape_cast %30 : vector<18xf32> to vector<18x1xf32>
    %cst_27 = arith.constant 1.250000e-01 : f32
    %32 = vector.broadcast %cst_27 : f32 to vector<18x1xf32>
    %33 = arith.mulf %31, %32 : vector<18x1xf32>
    %34 = arith.mulf %28, %28 : vector<18x1xf32>
    %35 = arith.subf %33, %34 : vector<18x1xf32>
    %cst_28 = arith.constant 0.000000e+00 : f32
    %36 = vector.broadcast %cst_28 : f32 to vector<18x1xf32>
    %37 = arith.maximumf %35, %36 : vector<18x1xf32>
    %38 = vector.broadcast %28 : vector<18x1xf32> to vector<18x128xf32>
    %39 = arith.subf %22, %38 : vector<18x128xf32>
    %cst_29 = arith.constant 9.99999974E-6 : f32
    %40 = vector.broadcast %cst_29 : f32 to vector<18x1xf32>
    %41 = arith.addf %37, %40 : vector<18x1xf32>
    %42 = math.rsqrt %41 : vector<18x1xf32>
    %43 = vector.broadcast %42 : vector<18x1xf32> to vector<18x128xf32>
    %44 = arith.mulf %39, %43 : vector<18x128xf32>
    %45 = vector.broadcast %23 : vector<1x128xf32> to vector<18x128xf32>
    %46 = arith.mulf %44, %45 : vector<18x128xf32>
    %47 = vector.broadcast %24 : vector<1x128xf32> to vector<18x128xf32>
    %48 = arith.addf %46, %47 : vector<18x128xf32>
    %c0_30 = arith.constant 0 : index
    %c0_31 = arith.constant 0 : index
    %49 = vector.load %arg6[%c0_30, %c0_31] : memref<128x128xf32, #tpu.memory_space<vmem>>, vector<128x128xf32>
    %cst_32 = arith.constant dense<0.000000e+00> : vector<18x128xf32>
    %50 = tpu.matmul %48, %49, %cst_32 {dimension_numbers = #tpu.dot_dimension_numbers<[1], [0], [0], [1], [0, 0, 1, 1], [], []>} : vector<18x128xf32>, vector<128x128xf32>, vector<18x128xf32> -> vector<18x128xf32>
    %c0_33 = arith.constant 0 : index
    %c0_34 = arith.constant 0 : index
    %51 = vector.load %arg7[%c0_33, %c0_34] : memref<1x128xf32, #tpu.memory_space<vmem>>, vector<1x128xf32>
    %52 = vector.broadcast %51 : vector<1x128xf32> to vector<18x128xf32>
    %53 = arith.addf %50, %52 : vector<18x128xf32>
    %c0_35 = arith.constant 0 : index
    %c0_36 = arith.constant 0 : index
    %54 = vector.load %arg8[%c0_35, %c0_36] : memref<1x128xf32, #tpu.memory_space<vmem>>, vector<1x128xf32>
    %c0_37 = arith.constant 0 : index
    %c0_38 = arith.constant 0 : index
    %55 = vector.load %arg9[%c0_37, %c0_38] : memref<1x128xf32, #tpu.memory_space<vmem>>, vector<1x128xf32>
    %cst_39 = arith.constant dense<0.000000e+00> : vector<18xf32>
    %56 = vector.multi_reduction <add>, %53, %cst_39 [1] : vector<18x128xf32> to vector<18xf32>
    %57 = vector.shape_cast %56 : vector<18xf32> to vector<18x1xf32>
    %cst_40 = arith.constant 2.500000e-01 : f32
    %58 = vector.broadcast %cst_40 : f32 to vector<18x1xf32>
    %59 = arith.mulf %57, %58 : vector<18x1xf32>
    %60 = arith.mulf %53, %53 : vector<18x128xf32>
    %cst_41 = arith.constant dense<0.000000e+00> : vector<18xf32>
    %61 = vector.multi_reduction <add>, %60, %cst_41 [1] : vector<18x128xf32> to vector<18xf32>
    %62 = vector.shape_cast %61 : vector<18xf32> to vector<18x1xf32>
    %cst_42 = arith.constant 2.500000e-01 : f32
    %63 = vector.broadcast %cst_42 : f32 to vector<18x1xf32>
    %64 = arith.mulf %62, %63 : vector<18x1xf32>
    %65 = arith.mulf %59, %59 : vector<18x1xf32>
    %66 = arith.subf %64, %65 : vector<18x1xf32>
    %cst_43 = arith.constant 0.000000e+00 : f32
    %67 = vector.broadcast %cst_43 : f32 to vector<18x1xf32>
    %68 = arith.maximumf %66, %67 : vector<18x1xf32>
    %69 = vector.broadcast %59 : vector<18x1xf32> to vector<18x128xf32>
    %70 = arith.subf %53, %69 : vector<18x128xf32>
    %cst_44 = arith.constant 9.99999974E-6 : f32
    %71 = vector.broadcast %cst_44 : f32 to vector<18x1xf32>
    %72 = arith.addf %68, %71 : vector<18x1xf32>
    %73 = math.rsqrt %72 : vector<18x1xf32>
    %74 = vector.broadcast %73 : vector<18x1xf32> to vector<18x128xf32>
    %75 = arith.mulf %70, %74 : vector<18x128xf32>
    %76 = vector.broadcast %54 : vector<1x128xf32> to vector<18x128xf32>
    %77 = arith.mulf %75, %76 : vector<18x128xf32>
    %78 = vector.broadcast %55 : vector<1x128xf32> to vector<18x128xf32>
    %79 = arith.addf %77, %78 : vector<18x128xf32>
    %80 = vector.extract_strided_slice %5 {offsets = [1, 0], sizes = [18, 128], strides = [1, 1]} : vector<20x128xf32> to vector<18x128xf32>
    %81 = arith.addf %79, %80 : vector<18x128xf32>
    %82 = tpu.iota {dimensions = array<i32: 0>} : vector<18x128xi32>
    %c1_i32 = arith.constant 1 : i32
    %83 = vector.broadcast %c1_i32 : i32 to vector<18x128xi32>
    %84 = arith.cmpi sge, %82, %83 : vector<18x128xi32>
    %c17_i32 = arith.constant 17 : i32
    %85 = vector.broadcast %c17_i32 : i32 to vector<18x128xi32>
    %86 = arith.cmpi slt, %82, %85 : vector<18x128xi32>
    %87 = arith.andi %84, %86 : vector<18x128xi1>
    %cst_45 = arith.constant 0.000000e+00 : f32
    %88 = vector.broadcast %cst_45 : f32 to vector<18x128xf32>
    %89 = arith.select %87, %81, %88 : vector<18x128xi1>, vector<18x128xf32>
    %90 = vector.extract_strided_slice %89 {offsets = [0, 0], sizes = [16, 128], strides = [1, 1]} : vector<18x128xf32> to vector<16x128xf32>
    %c0_46 = arith.constant 0 : index
    %c0_47 = arith.constant 0 : index
    %c0_48 = arith.constant 0 : index
    %91 = vector.load %arg10[%c0_46, %c0_47, %c0_48] : memref<3x128x128xf32, #tpu.memory_space<vmem>>, vector<1x128x128xf32>
    %92 = vector.shape_cast %91 : vector<1x128x128xf32> to vector<128x128xf32>
    %cst_49 = arith.constant dense<0.000000e+00> : vector<16x128xf32>
    %93 = tpu.matmul %90, %92, %cst_49 {dimension_numbers = #tpu.dot_dimension_numbers<[1], [0], [0], [1], [0, 0, 1, 1], [], []>} : vector<16x128xf32>, vector<128x128xf32>, vector<16x128xf32> -> vector<16x128xf32>
    %94 = vector.extract_strided_slice %89 {offsets = [1, 0], sizes = [16, 128], strides = [1, 1]} : vector<18x128xf32> to vector<16x128xf32>
    %c1_50 = arith.constant 1 : index
    %c0_51 = arith.constant 0 : index
    %c0_52 = arith.constant 0 : index
    %95 = vector.load %arg10[%c1_50, %c0_51, %c0_52] : memref<3x128x128xf32, #tpu.memory_space<vmem>>, vector<1x128x128xf32>
    %96 = vector.shape_cast %95 : vector<1x128x128xf32> to vector<128x128xf32>
    %cst_53 = arith.constant dense<0.000000e+00> : vector<16x128xf32>
    %97 = tpu.matmul %94, %96, %cst_53 {dimension_numbers = #tpu.dot_dimension_numbers<[1], [0], [0], [1], [0, 0, 1, 1], [], []>} : vector<16x128xf32>, vector<128x128xf32>, vector<16x128xf32> -> vector<16x128xf32>
    %98 = arith.addf %93, %97 : vector<16x128xf32>
    %99 = vector.extract_strided_slice %89 {offsets = [2, 0], sizes = [16, 128], strides = [1, 1]} : vector<18x128xf32> to vector<16x128xf32>
    %c2_54 = arith.constant 2 : index
    %c0_55 = arith.constant 0 : index
    %c0_56 = arith.constant 0 : index
    %100 = vector.load %arg10[%c2_54, %c0_55, %c0_56] : memref<3x128x128xf32, #tpu.memory_space<vmem>>, vector<1x128x128xf32>
    %101 = vector.shape_cast %100 : vector<1x128x128xf32> to vector<128x128xf32>
    %cst_57 = arith.constant dense<0.000000e+00> : vector<16x128xf32>
    %102 = tpu.matmul %99, %101, %cst_57 {dimension_numbers = #tpu.dot_dimension_numbers<[1], [0], [0], [1], [0, 0, 1, 1], [], []>} : vector<16x128xf32>, vector<128x128xf32>, vector<16x128xf32> -> vector<16x128xf32>
    %103 = arith.addf %98, %102 : vector<16x128xf32>
    %c0_58 = arith.constant 0 : index
    %c0_59 = arith.constant 0 : index
    %104 = vector.load %arg11[%c0_58, %c0_59] : memref<1x128xf32, #tpu.memory_space<vmem>>, vector<1x128xf32>
    %105 = vector.broadcast %104 : vector<1x128xf32> to vector<16x128xf32>
    %106 = arith.addf %103, %105 : vector<16x128xf32>
    %c0_60 = arith.constant 0 : index
    %c0_61 = arith.constant 0 : index
    %107 = vector.load %arg12[%c0_60, %c0_61] : memref<1x128xf32, #tpu.memory_space<vmem>>, vector<1x128xf32>
    %c0_62 = arith.constant 0 : index
    %c0_63 = arith.constant 0 : index
    %108 = vector.load %arg13[%c0_62, %c0_63] : memref<1x128xf32, #tpu.memory_space<vmem>>, vector<1x128xf32>
    %cst_64 = arith.constant dense<0.000000e+00> : vector<16xf32>
    %109 = vector.multi_reduction <add>, %106, %cst_64 [1] : vector<16x128xf32> to vector<16xf32>
    %110 = vector.shape_cast %109 : vector<16xf32> to vector<16x1xf32>
    %cst_65 = arith.constant 1.250000e-01 : f32
    %111 = vector.broadcast %cst_65 : f32 to vector<16x1xf32>
    %112 = arith.mulf %110, %111 : vector<16x1xf32>
    %113 = arith.mulf %106, %106 : vector<16x128xf32>
    %cst_66 = arith.constant dense<0.000000e+00> : vector<16xf32>
    %114 = vector.multi_reduction <add>, %113, %cst_66 [1] : vector<16x128xf32> to vector<16xf32>
    %115 = vector.shape_cast %114 : vector<16xf32> to vector<16x1xf32>
    %cst_67 = arith.constant 1.250000e-01 : f32
    %116 = vector.broadcast %cst_67 : f32 to vector<16x1xf32>
    %117 = arith.mulf %115, %116 : vector<16x1xf32>
    %118 = arith.mulf %112, %112 : vector<16x1xf32>
    %119 = arith.subf %117, %118 : vector<16x1xf32>
    %cst_68 = arith.constant 0.000000e+00 : f32
    %120 = vector.broadcast %cst_68 : f32 to vector<16x1xf32>
    %121 = arith.maximumf %119, %120 : vector<16x1xf32>
    %122 = vector.broadcast %112 : vector<16x1xf32> to vector<16x128xf32>
    %123 = arith.subf %106, %122 : vector<16x128xf32>
    %cst_69 = arith.constant 9.99999974E-6 : f32
    %124 = vector.broadcast %cst_69 : f32 to vector<16x1xf32>
    %125 = arith.addf %121, %124 : vector<16x1xf32>
    %126 = math.rsqrt %125 : vector<16x1xf32>
    %127 = vector.broadcast %126 : vector<16x1xf32> to vector<16x128xf32>
    %128 = arith.mulf %123, %127 : vector<16x128xf32>
    %129 = vector.broadcast %107 : vector<1x128xf32> to vector<16x128xf32>
    %130 = arith.mulf %128, %129 : vector<16x128xf32>
    %131 = vector.broadcast %108 : vector<1x128xf32> to vector<16x128xf32>
    %132 = arith.addf %130, %131 : vector<16x128xf32>
    %c0_70 = arith.constant 0 : index
    %c0_71 = arith.constant 0 : index
    %133 = vector.load %arg14[%c0_70, %c0_71] : memref<128x128xf32, #tpu.memory_space<vmem>>, vector<128x128xf32>
    %cst_72 = arith.constant dense<0.000000e+00> : vector<16x128xf32>
    %134 = tpu.matmul %132, %133, %cst_72 {dimension_numbers = #tpu.dot_dimension_numbers<[1], [0], [0], [1], [0, 0, 1, 1], [], []>} : vector<16x128xf32>, vector<128x128xf32>, vector<16x128xf32> -> vector<16x128xf32>
    %c0_73 = arith.constant 0 : index
    %c0_74 = arith.constant 0 : index
    %135 = vector.load %arg15[%c0_73, %c0_74] : memref<1x128xf32, #tpu.memory_space<vmem>>, vector<1x128xf32>
    %136 = vector.broadcast %135 : vector<1x128xf32> to vector<16x128xf32>
    %137 = arith.addf %134, %136 : vector<16x128xf32>
    %c0_75 = arith.constant 0 : index
    %c0_76 = arith.constant 0 : index
    %138 = vector.load %arg16[%c0_75, %c0_76] : memref<1x128xf32, #tpu.memory_space<vmem>>, vector<1x128xf32>
    %c0_77 = arith.constant 0 : index
    %c0_78 = arith.constant 0 : index
    %139 = vector.load %arg17[%c0_77, %c0_78] : memref<1x128xf32, #tpu.memory_space<vmem>>, vector<1x128xf32>
    %cst_79 = arith.constant dense<0.000000e+00> : vector<16xf32>
    %140 = vector.multi_reduction <add>, %137, %cst_79 [1] : vector<16x128xf32> to vector<16xf32>
    %141 = vector.shape_cast %140 : vector<16xf32> to vector<16x1xf32>
    %cst_80 = arith.constant 1.250000e-01 : f32
    %142 = vector.broadcast %cst_80 : f32 to vector<16x1xf32>
    %143 = arith.mulf %141, %142 : vector<16x1xf32>
    %144 = arith.mulf %137, %137 : vector<16x128xf32>
    %cst_81 = arith.constant dense<0.000000e+00> : vector<16xf32>
    %145 = vector.multi_reduction <add>, %144, %cst_81 [1] : vector<16x128xf32> to vector<16xf32>
    %146 = vector.shape_cast %145 : vector<16xf32> to vector<16x1xf32>
    %cst_82 = arith.constant 1.250000e-01 : f32
    %147 = vector.broadcast %cst_82 : f32 to vector<16x1xf32>
    %148 = arith.mulf %146, %147 : vector<16x1xf32>
    %149 = arith.mulf %143, %143 : vector<16x1xf32>
    %150 = arith.subf %148, %149 : vector<16x1xf32>
    %cst_83 = arith.constant 0.000000e+00 : f32
    %151 = vector.broadcast %cst_83 : f32 to vector<16x1xf32>
    %152 = arith.maximumf %150, %151 : vector<16x1xf32>
    %153 = vector.broadcast %143 : vector<16x1xf32> to vector<16x128xf32>
    %154 = arith.subf %137, %153 : vector<16x128xf32>
    %cst_84 = arith.constant 9.99999974E-6 : f32
    %155 = vector.broadcast %cst_84 : f32 to vector<16x1xf32>
    %156 = arith.addf %152, %155 : vector<16x1xf32>
    %157 = math.rsqrt %156 : vector<16x1xf32>
    %158 = vector.broadcast %157 : vector<16x1xf32> to vector<16x128xf32>
    %159 = arith.mulf %154, %158 : vector<16x128xf32>
    %160 = vector.broadcast %138 : vector<1x128xf32> to vector<16x128xf32>
    %161 = arith.mulf %159, %160 : vector<16x128xf32>
    %162 = vector.broadcast %139 : vector<1x128xf32> to vector<16x128xf32>
    %163 = arith.addf %161, %162 : vector<16x128xf32>
    %c0_85 = arith.constant 0 : index
    %c0_86 = arith.constant 0 : index
    %c0_87 = arith.constant 0 : index
    %164 = vector.load %arg18[%c0_85, %c0_86, %c0_87] : memref<1x16x128xf32, #tpu.memory_space<vmem>>, vector<1x16x128xf32>
    %165 = vector.shape_cast %164 : vector<1x16x128xf32> to vector<16x128xf32>
    %166 = vector.shape_cast %163 : vector<16x128xf32> to vector<1x16x128xf32>
    tpu.vector_store %arg18[%c0_85, %c0_86, %c0_87], %166 {strides = array<i32>} : memref<1x16x128xf32, #tpu.memory_space<vmem>>, vector<1x16x128xf32>,
    return
  }
  func.func @transform_0(%arg0: i32) -> (i32, i32, i32) {
    %c0_i32 = arith.constant 0 : i32
    %c0_i32_0 = arith.constant 0 : i32
    %c0_i32_1 = arith.constant 0 : i32
    return %arg0, %c0_i32, %c0_i32_0 : i32, i32, i32
  }
  func.func @transform_1(%arg0: i32) -> (i32, i32, i32) {
    %c0_i32 = arith.constant 0 : i32
    %c0_i32_0 = arith.constant 0 : i32
    %c0_i32_1 = arith.constant 0 : i32
    %c0_i32_2 = arith.constant 0 : i32
    return %c0_i32, %c0_i32_0, %c0_i32_1 : i32, i32, i32
  }
  func.func @transform_2(%arg0: i32) -> (i32, i32) {
    %c0_i32 = arith.constant 0 : i32
    %c0_i32_0 = arith.constant 0 : i32
    %c0_i32_1 = arith.constant 0 : i32
    return %c0_i32, %c0_i32_0 : i32, i32
  }
  func.func @transform_3(%arg0: i32) -> (i32, i32) {
    %c0_i32 = arith.constant 0 : i32
    %c0_i32_0 = arith.constant 0 : i32
    %c0_i32_1 = arith.constant 0 : i32
    return %c0_i32, %c0_i32_0 : i32, i32
  }
  func.func @transform_4(%arg0: i32) -> (i32, i32) {
    %c0_i32 = arith.constant 0 : i32
    %c0_i32_0 = arith.constant 0 : i32
    %c0_i32_1 = arith.constant 0 : i32
    return %c0_i32, %c0_i32_0 : i32, i32
  }
  func.func @transform_5(%arg0: i32) -> (i32, i32) {
    %c0_i32 = arith.constant 0 : i32
    %c0_i32_0 = arith.constant 0 : i32
    %c0_i32_1 = arith.constant 0 : i32
    return %c0_i32, %c0_i32_0 : i32, i32
  }
  func.func @transform_6(%arg0: i32) -> (i32, i32) {
    %c0_i32 = arith.constant 0 : i32
    %c0_i32_0 = arith.constant 0 : i32
    %c0_i32_1 = arith.constant 0 : i32
    return %c0_i32, %c0_i32_0 : i32, i32
  }
  func.func @transform_7(%arg0: i32) -> (i32, i32) {
    %c0_i32 = arith.constant 0 : i32
    %c0_i32_0 = arith.constant 0 : i32
    %c0_i32_1 = arith.constant 0 : i32
    return %c0_i32, %c0_i32_0 : i32, i32
  }
  func.func @transform_8(%arg0: i32) -> (i32, i32) {
    %c0_i32 = arith.constant 0 : i32
    %c0_i32_0 = arith.constant 0 : i32
    %c0_i32_1 = arith.constant 0 : i32
    return %c0_i32, %c0_i32_0 : i32, i32
  }
  func.func @transform_9(%arg0: i32) -> (i32, i32, i32) {
    %c0_i32 = arith.constant 0 : i32
    %c0_i32_0 = arith.constant 0 : i32
    %c0_i32_1 = arith.constant 0 : i32
    %c0_i32_2 = arith.constant 0 : i32
    return %c0_i32, %c0_i32_0, %c0_i32_1 : i32, i32, i32
  }
  func.func @transform_10(%arg0: i32) -> (i32, i32) {
    %c0_i32 = arith.constant 0 : i32
    %c0_i32_0 = arith.constant 0 : i32
    %c0_i32_1 = arith.constant 0 : i32
    return %c0_i32, %c0_i32_0 : i32, i32
  }
  func.func @transform_11(%arg0: i32) -> (i32, i32) {
    %c0_i32 = arith.constant 0 : i32
    %c0_i32_0 = arith.constant 0 : i32
    %c0_i32_1 = arith.constant 0 : i32
    return %c0_i32, %c0_i32_0 : i32, i32
  }
  func.func @transform_12(%arg0: i32) -> (i32, i32) {
    %c0_i32 = arith.constant 0 : i32
    %c0_i32_0 = arith.constant 0 : i32
    %c0_i32_1 = arith.constant 0 : i32
    return %c0_i32, %c0_i32_0 : i32, i32
  }
  func.func @transform_13(%arg0: i32) -> (i32, i32) {
    %c0_i32 = arith.constant 0 : i32
    %c0_i32_0 = arith.constant 0 : i32
    %c0_i32_1 = arith.constant 0 : i32
    return %c0_i32, %c0_i32_0 : i32, i32
  }
  func.func @transform_14(%arg0: i32) -> (i32, i32) {
    %c0_i32 = arith.constant 0 : i32
    %c0_i32_0 = arith.constant 0 : i32
    %c0_i32_1 = arith.constant 0 : i32
    return %c0_i32, %c0_i32_0 : i32, i32
  }
  func.func @transform_15(%arg0: i32) -> (i32, i32) {
    %c0_i32 = arith.constant 0 : i32
    %c0_i32_0 = arith.constant 0 : i32
    %c0_i32_1 = arith.constant 0 : i32
    return %c0_i32, %c0_i32_0 : i32, i32
  }
  func.func @transform_16(%arg0: i32) -> (i32, i32) {
    %c0_i32 = arith.constant 0 : i32
    %c0_i32_0 = arith.constant 0 : i32
    %c0_i32_1 = arith.constant 0 : i32
    return %c0_i32, %c0_i32_0 : i32, i32
  }
  func.func @transform_17(%arg0: i32) -> (i32, i32, i32) {
    %c0_i32 = arith.constant 0 : i32
    %c0_i32_0 = arith.constant 0 : i32
    %c0_i32_1 = arith.constant 0 : i32
    return %arg0, %c0_i32, %c0_i32_0 : i32, i32, i32
  }
}

</mosaic_0001>

<llo_original>
// kernel: fused_mbconv1d_model.1
$region0: #{fused_mbconv1d_model.1}
  #allocation0 [shape = 'u32[]', space=smem, size = 0x4, offset = 0x4, fixed_abs, tag = 'smem constant byte address 0x4 - core index']
  #allocation1 [shape = 'u32[144,128]{1,0:T(1,128)}', space=vmem, size = 0x12000, scoped, tag = 'internal scratch']
  #allocation2 [shape = 'f32[20,128]{1,0:T(8,128)}', space=vmem, size = 0x3000, scoped, tag = 'scratch operand']
  %s0 = inlined_call_operand.vmem [shape: f32[2,16,4], index: 0, kind: input, shape index: {}]
  %s1 = inlined_call_operand.vmem [shape: f32[3,128,128], index: 1, kind: input, shape index: {}]
  %s2 = inlined_call_operand.vmem [shape: f32[1,128], index: 2, kind: input, shape index: {}]
  %s3 = inlined_call_operand.vmem [shape: f32[1,128], index: 3, kind: input, shape index: {}]
  %s4 = inlined_call_operand.vmem [shape: f32[1,128], index: 4, kind: input, shape index: {}]
  %s5 = inlined_call_operand.vmem [shape: f32[128,128], index: 5, kind: input, shape index: {}]
  %s6 = inlined_call_operand.vmem [shape: f32[1,128], index: 6, kind: input, shape index: {}]
  %s7 = inlined_call_operand.vmem [shape: f32[1,128], index: 7, kind: input, shape index: {}]
  %s8 = inlined_call_operand.vmem [shape: f32[1,128], index: 8, kind: input, shape index: {}]
  %s9 = inlined_call_operand.vmem [shape: f32[3,128,128], index: 9, kind: input, shape index: {}]
  %s10 = inlined_call_operand.vmem [shape: f32[1,128], index: 10, kind: input, shape index: {}]
  %s11 = inlined_call_operand.vmem [shape: f32[1,128], index: 11, kind: input, shape index: {}]
  %s12 = inlined_call_operand.vmem [shape: f32[1,128], index: 12, kind: input, shape index: {}]
  %s13 = inlined_call_operand.vmem [shape: f32[128,128], index: 13, kind: input, shape index: {}]
  %s14 = inlined_call_operand.vmem [shape: f32[1,128], index: 14, kind: input, shape index: {}]
  %s15 = inlined_call_operand.vmem [shape: f32[1,128], index: 15, kind: input, shape index: {}]
  %s16 = inlined_call_operand.vmem [shape: f32[1,128], index: 16, kind: input, shape index: {}]
  %s17 = inlined_call_operand.vmem [shape: f32[2,16,128], index: 17, kind: output, shape index: {}]
  %s18 = sld [smem:[#allocation0]]
  $region101: #{fused_mbconv1d_model.1} parent=0
    _
  %s20 = ssub.s32 1, %s18
  %s21 = scalar_select 0, %s20, %s18
  loop: start=0, step=1, limit=4
  $region2: #{fused_mbconv1d_model.1} parent=0 // loop_pre_header
    _
  $region3: #{fused_mbconv1d_model.1} parent=0 // loop_header
    %s23 = sphi 0, %s27
    %p24 = scmp.ge.s32.totalorder %s23, 4
    %s33 = sphi 0, %s35
    %s36 = sphi 0, %s33
    %s37 = sphi 0, %s36
    %s53 = sphi 0, %s37
    %s57 = sphi 0, %s57
    %s59 = sphi 0, %s57
    %s60 = sphi 0, %s59
    %s74 = sphi 0, %s60
    %s78 = sphi 0, %s78
    %s80 = sphi 0, %s78
    %s81 = sphi 0, %s80
    %s95 = sphi 0, %s81
    %s99 = sphi 0, %s99
    %s101 = sphi 0, %s99
    %s102 = sphi 0, %s101
    %s116 = sphi 0, %s102
    %s120 = sphi 0, %s120
    %s122 = sphi 0, %s120
    %s123 = sphi 0, %s122
    %s137 = sphi 0, %s123
    %s141 = sphi 0, %s141
    %s143 = sphi 0, %s141
    %s144 = sphi 0, %s143
    %s158 = sphi 0, %s144
    %s162 = sphi 0, %s162
    %s164 = sphi 0, %s162
    %s165 = sphi 0, %s164
    %s179 = sphi 0, %s165
    %s183 = sphi 0, %s183
    %s185 = sphi 0, %s183
    %s186 = sphi 0, %s185
    %s200 = sphi 0, %s186
    %s204 = sphi 0, %s204
    %s206 = sphi 0, %s204
    %s207 = sphi 0, %s206
    %s221 = sphi 0, %s207
    %s225 = sphi 0, %s225
    %s227 = sphi 0, %s225
    %s228 = sphi 0, %s227
    %s242 = sphi 0, %s228
    %s246 = sphi 0, %s246
    %s248 = sphi 0, %s246
    %s249 = sphi 0, %s248
    %s263 = sphi 0, %s249
    %s267 = sphi 0, %s267
    %s269 = sphi 0, %s267
    %s270 = sphi 0, %s269
    %s284 = sphi 0, %s270
    %s288 = sphi 0, %s288
    %s290 = sphi 0, %s288
    %s291 = sphi 0, %s290
    %s305 = sphi 0, %s291
    %s309 = sphi 0, %s309
    %s311 = sphi 0, %s309
    %s312 = sphi 0, %s311
    %s326 = sphi 0, %s312
    %s330 = sphi 0, %s330
    %s332 = sphi 0, %s330
    %s333 = sphi 0, %s332
    %s347 = sphi 0, %s333
    %s351 = sphi 0, %s351
    %s353 = sphi 0, %s351
    %s354 = sphi 0, %s353
    %s368 = sphi 0, %s354
    %s372 = sphi 0, %s372
    %s374 = sphi 0, %s372
    %s375 = sphi 0, %s374
    %s389 = sphi 0, %s375
    %s395 = sphi 0, %s397
    %s398 = sphi 0, %s395
    %s399 = sphi 0, %s398
    %s415 = sphi 0, %s399
  $region4: #{fused_mbconv1d_model.1} parent=0 // loop_header_branch
    %26 = sbr.rel (%p24) target = $region8
  $region5: #{fused_mbconv1d_model.1} parent=0 // loop_body
    %s28 = ssub.s32 %s23, 1
    %s29 = ssub.s32 %s23, 2
    %s30 = sadd.s32 %s23, 1
    %s31 = ssub.s32 %s23, %s30
    %p32 = scmp.eq.s32.totalorder %s31, 0
    %s34 = sadd.s32 %s33, 1
    %s35 = scalar_select %p32, %s33, %s34
    %p38 = pneg %p32
    %p39 = scmp.eq.s32.totalorder %s23, 1
    %p40 = por %p38, %p39
    %p41 = scmp.ne.s32.totalorder %s33, %s36
    %p42 = scmp.eq.s32.totalorder %s23, 0
    %p43 = por %p41, %p42
    %p44 = scmp.ne.s32.totalorder %s33, %s36
    %p45 = scmp.eq.s32.totalorder %s28, 1
    %p46 = por %p44, %p45
    %p47 = scmp.ne.s32.totalorder %s36, %s37
    %p48 = scmp.eq.s32.totalorder %s28, 0
    %p49 = por %p47, %p48
    %p50 = scmp.ne.s32.totalorder %s36, %s37
    %p51 = scmp.eq.s32.totalorder %s29, 1
    %p52 = por %p50, %p51
    %p54 = scmp.ne.s32.totalorder %s37, %s53
    %p55 = scmp.eq.s32.totalorder %s29, 0
    %p56 = por %p54, %p55
    %s58 = sadd.s32 %s57, 1
    %p61 = scmp.eq.s32.totalorder %s23, 1
    %p62 = scmp.ne.s32.totalorder %s57, %s59
    %p63 = scmp.eq.s32.totalorder %s23, 0
    %p64 = por %p62, %p63
    %p65 = scmp.ne.s32.totalorder %s57, %s59
    %p66 = scmp.eq.s32.totalorder %s28, 1
    %p67 = por %p65, %p66
    %p68 = scmp.ne.s32.totalorder %s59, %s60
    %p69 = scmp.eq.s32.totalorder %s28, 0
    %p70 = por %p68, %p69
    %p71 = scmp.ne.s32.totalorder %s59, %s60
    %p72 = scmp.eq.s32.totalorder %s29, 1
    %p73 = por %p71, %p72
    %p75 = scmp.ne.s32.totalorder %s60, %s74
    %p76 = scmp.eq.s32.totalorder %s29, 0
    %p77 = por %p75, %p76
    %s79 = sadd.s32 %s78, 1
    %p82 = scmp.eq.s32.totalorder %s23, 1
    %p83 = scmp.ne.s32.totalorder %s78, %s80
    %p84 = scmp.eq.s32.totalorder %s23, 0
    %p85 = por %p83, %p84
    %p86 = scmp.ne.s32.totalorder %s78, %s80
    %p87 = scmp.eq.s32.totalorder %s28, 1
    %p88 = por %p86, %p87
    %p89 = scmp.ne.s32.totalorder %s80, %s81
    %p90 = scmp.eq.s32.totalorder %s28, 0
    %p91 = por %p89, %p90
    %p92 = scmp.ne.s32.totalorder %s80, %s81
    %p93 = scmp.eq.s32.totalorder %s29, 1
    %p94 = por %p92, %p93
    %p96 = scmp.ne.s32.totalorder %s81, %s95
    %p97 = scmp.eq.s32.totalorder %s29, 0
    %p98 = por %p96, %p97
    %s100 = sadd.s32 %s99, 1
    %p103 = scmp.eq.s32.totalorder %s23, 1
    %p104 = scmp.ne.s32.totalorder %s99, %s101
    %p105 = scmp.eq.s32.totalorder %s23, 0
    %p106 = por %p104, %p105
    %p107 = scmp.ne.s32.totalorder %s99, %s101
    %p108 = scmp.eq.s32.totalorder %s28, 1
    %p109 = por %p107, %p108
    %p110 = scmp.ne.s32.totalorder %s101, %s102
    %p111 = scmp.eq.s32.totalorder %s28, 0
    %p112 = por %p110, %p111
    %p113 = scmp.ne.s32.totalorder %s101, %s102
    %p114 = scmp.eq.s32.totalorder %s29, 1
    %p115 = por %p113, %p114
    %p117 = scmp.ne.s32.totalorder %s102, %s116
    %p118 = scmp.eq.s32.totalorder %s29, 0
    %p119 = por %p117, %p118
    %s121 = sadd.s32 %s120, 1
    %p124 = scmp.eq.s32.totalorder %s23, 1
    %p125 = scmp.ne.s32.totalorder %s120, %s122
    %p126 = scmp.eq.s32.totalorder %s23, 0
    %p127 = por %p125, %p126
    %p128 = scmp.ne.s32.totalorder %s120, %s122
    %p129 = scmp.eq.s32.totalorder %s28, 1
    %p130 = por %p128, %p129
    %p131 = scmp.ne.s32.totalorder %s122, %s123
    %p132 = scmp.eq.s32.totalorder %s28, 0
    %p133 = por %p131, %p132
    %p134 = scmp.ne.s32.totalorder %s122, %s123
    %p135 = scmp.eq.s32.totalorder %s29, 1
    %p136 = por %p134, %p135
    %p138 = scmp.ne.s32.totalorder %s123, %s137
    %p139 = scmp.eq.s32.totalorder %s29, 0
    %p140 = por %p138, %p139
    %s142 = sadd.s32 %s141, 1
    %p145 = scmp.eq.s32.totalorder %s23, 1
    %p146 = scmp.ne.s32.totalorder %s141, %s143
    %p147 = scmp.eq.s32.totalorder %s23, 0
    %p148 = por %p146, %p147
    %p149 = scmp.ne.s32.totalorder %s141, %s143
    %p150 = scmp.eq.s32.totalorder %s28, 1
    %p151 = por %p149, %p150
    %p152 = scmp.ne.s32.totalorder %s143, %s144
    %p153 = scmp.eq.s32.totalorder %s28, 0
    %p154 = por %p152, %p153
    %p155 = scmp.ne.s32.totalorder %s143, %s144
    %p156 = scmp.eq.s32.totalorder %s29, 1
    %p157 = por %p155, %p156
    %p159 = scmp.ne.s32.totalorder %s144, %s158
    %p160 = scmp.eq.s32.totalorder %s29, 0
    %p161 = por %p159, %p160
    %s163 = sadd.s32 %s162, 1
    %p166 = scmp.eq.s32.totalorder %s23, 1
    %p167 = scmp.ne.s32.totalorder %s162, %s164
    %p168 = scmp.eq.s32.totalorder %s23, 0
    %p169 = por %p167, %p168
    %p170 = scmp.ne.s32.totalorder %s162, %s164
    %p171 = scmp.eq.s32.totalorder %s28, 1
    %p172 = por %p170, %p171
    %p173 = scmp.ne.s32.totalorder %s164, %s165
    %p174 = scmp.eq.s32.totalorder %s28, 0
    %p175 = por %p173, %p174
    %p176 = scmp.ne.s32.totalorder %s164, %s165
    %p177 = scmp.eq.s32.totalorder %s29, 1
    %p178 = por %p176, %p177
    %p180 = scmp.ne.s32.totalorder %s165, %s179
    %p181 = scmp.eq.s32.totalorder %s29, 0
    %p182 = por %p180, %p181
    %s184 = sadd.s32 %s183, 1
    %p187 = scmp.eq.s32.totalorder %s23, 1
    %p188 = scmp.ne.s32.totalorder %s183, %s185
    %p189 = scmp.eq.s32.totalorder %s23, 0
    %p190 = por %p188, %p189
    %p191 = scmp.ne.s32.totalorder %s183, %s185
    %p192 = scmp.eq.s32.totalorder %s28, 1
    %p193 = por %p191, %p192
    %p194 = scmp.ne.s32.totalorder %s185, %s186
    %p195 = scmp.eq.s32.totalorder %s28, 0
    %p196 = por %p194, %p195
    %p197 = scmp.ne.s32.totalorder %s185, %s186
    %p198 = scmp.eq.s32.totalorder %s29, 1
    %p199 = por %p197, %p198
    %p201 = scmp.ne.s32.totalorder %s186, %s200
    %p202 = scmp.eq.s32.totalorder %s29, 0
    %p203 = por %p201, %p202
    %s205 = sadd.s32 %s204, 1
    %p208 = scmp.eq.s32.totalorder %s23, 1
    %p209 = scmp.ne.s32.totalorder %s204, %s206
    %p210 = scmp.eq.s32.totalorder %s23, 0
    %p211 = por %p209, %p210
    %p212 = scmp.ne.s32.totalorder %s204, %s206
    %p213 = scmp.eq.s32.totalorder %s28, 1
    %p214 = por %p212, %p213
    %p215 = scmp.ne.s32.totalorder %s206, %s207
    %p216 = scmp.eq.s32.totalorder %s28, 0
    %p217 = por %p215, %p216
    %p218 = scmp.ne.s32.totalorder %s206, %s207
    %p219 = scmp.eq.s32.totalorder %s29, 1
    %p220 = por %p218, %p219
    %p222 = scmp.ne.s32.totalorder %s207, %s221
    %p223 = scmp.eq.s32.totalorder %s29, 0
    %p224 = por %p222, %p223
    %s226 = sadd.s32 %s225, 1
    %p229 = scmp.eq.s32.totalorder %s23, 1
    %p230 = scmp.ne.s32.totalorder %s225, %s227
    %p231 = scmp.eq.s32.totalorder %s23, 0
    %p232 = por %p230, %p231
    %p233 = scmp.ne.s32.totalorder %s225, %s227
    %p234 = scmp.eq.s32.totalorder %s28, 1
    %p235 = por %p233, %p234
    %p236 = scmp.ne.s32.totalorder %s227, %s228
    %p237 = scmp.eq.s32.totalorder %s28, 0
    %p238 = por %p236, %p237
    %p239 = scmp.ne.s32.totalorder %s227, %s228
    %p240 = scmp.eq.s32.totalorder %s29, 1
    %p241 = por %p239, %p240
    %p243 = scmp.ne.s32.totalorder %s228, %s242
    %p244 = scmp.eq.s32.totalorder %s29, 0
    %p245 = por %p243, %p244
    %s247 = sadd.s32 %s246, 1
    %p250 = scmp.eq.s32.totalorder %s23, 1
    %p251 = scmp.ne.s32.totalorder %s246, %s248
    %p252 = scmp.eq.s32.totalorder %s23, 0
    %p253 = por %p251, %p252
    %p254 = scmp.ne.s32.totalorder %s246, %s248
    %p255 = scmp.eq.s32.totalorder %s28, 1
    %p256 = por %p254, %p255
    %p257 = scmp.ne.s32.totalorder %s248, %s249
    %p258 = scmp.eq.s32.totalorder %s28, 0
    %p259 = por %p257, %p258
    %p260 = scmp.ne.s32.totalorder %s248, %s249
    %p261 = scmp.eq.s32.totalorder %s29, 1
    %p262 = por %p260, %p261
    %p264 = scmp.ne.s32.totalorder %s249, %s263
    %p265 = scmp.eq.s32.totalorder %s29, 0
    %p266 = por %p264, %p265
    %s268 = sadd.s32 %s267, 1
    %p271 = scmp.eq.s32.totalorder %s23, 1
    %p272 = scmp.ne.s32.totalorder %s267, %s269
    %p273 = scmp.eq.s32.totalorder %s23, 0
    %p274 = por %p272, %p273
    %p275 = scmp.ne.s32.totalorder %s267, %s269
    %p276 = scmp.eq.s32.totalorder %s28, 1
    %p277 = por %p275, %p276
    %p278 = scmp.ne.s32.totalorder %s269, %s270
    %p279 = scmp.eq.s32.totalorder %s28, 0
    %p280 = por %p278, %p279
    %p281 = scmp.ne.s32.totalorder %s269, %s270
    %p282 = scmp.eq.s32.totalorder %s29, 1
    %p283 = por %p281, %p282
    %p285 = scmp.ne.s32.totalorder %s270, %s284
    %p286 = scmp.eq.s32.totalorder %s29, 0
    %p287 = por %p285, %p286
    %s289 = sadd.s32 %s288, 1
    %p292 = scmp.eq.s32.totalorder %s23, 1
    %p293 = scmp.ne.s32.totalorder %s288, %s290
    %p294 = scmp.eq.s32.totalorder %s23, 0
    %p295 = por %p293, %p294
    %p296 = scmp.ne.s32.totalorder %s288, %s290
    %p297 = scmp.eq.s32.totalorder %s28, 1
    %p298 = por %p296, %p297
    %p299 = scmp.ne.s32.totalorder %s290, %s291
    %p300 = scmp.eq.s32.totalorder %s28, 0
    %p301 = por %p299, %p300
    %p302 = scmp.ne.s32.totalorder %s290, %s291
    %p303 = scmp.eq.s32.totalorder %s29, 1
    %p304 = por %p302, %p303
    %p306 = scmp.ne.s32.totalorder %s291, %s305
    %p307 = scmp.eq.s32.totalorder %s29, 0
    %p308 = por %p306, %p307
    %s310 = sadd.s32 %s309, 1
    %p313 = scmp.eq.s32.totalorder %s23, 1
    %p314 = scmp.ne.s32.totalorder %s309, %s311
    %p315 = scmp.eq.s32.totalorder %s23, 0
    %p316 = por %p314, %p315
    %p317 = scmp.ne.s32.totalorder %s309, %s311
    %p318 = scmp.eq.s32.totalorder %s28, 1
    %p319 = por %p317, %p318
    %p320 = scmp.ne.s32.totalorder %s311, %s312
    %p321 = scmp.eq.s32.totalorder %s28, 0
    %p322 = por %p320, %p321
    %p323 = scmp.ne.s32.totalorder %s311, %s312
    %p324 = scmp.eq.s32.totalorder %s29, 1
    %p325 = por %p323, %p324
    %p327 = scmp.ne.s32.totalorder %s312, %s326
    %p328 = scmp.eq.s32.totalorder %s29, 0
    %p329 = por %p327, %p328
    %s331 = sadd.s32 %s330, 1
    %p334 = scmp.eq.s32.totalorder %s23, 1
    %p335 = scmp.ne.s32.totalorder %s330, %s332
    %p336 = scmp.eq.s32.totalorder %s23, 0
    %p337 = por %p335, %p336
    %p338 = scmp.ne.s32.totalorder %s330, %s332
    %p339 = scmp.eq.s32.totalorder %s28, 1
    %p340 = por %p338, %p339
    %p341 = scmp.ne.s32.totalorder %s332, %s333
    %p342 = scmp.eq.s32.totalorder %s28, 0
    %p343 = por %p341, %p342
    %p344 = scmp.ne.s32.totalorder %s332, %s333
    %p345 = scmp.eq.s32.totalorder %s29, 1
    %p346 = por %p344, %p345
    %p348 = scmp.ne.s32.totalorder %s333, %s347
    %p349 = scmp.eq.s32.totalorder %s29, 0
    %p350 = por %p348, %p349
    %s352 = sadd.s32 %s351, 1
    %p355 = scmp.eq.s32.totalorder %s23, 1
    %p356 = scmp.ne.s32.totalorder %s351, %s353
    %p357 = scmp.eq.s32.totalorder %s23, 0
    %p358 = por %p356, %p357
    %p359 = scmp.ne.s32.totalorder %s351, %s353
    %p360 = scmp.eq.s32.totalorder %s28, 1
    %p361 = por %p359, %p360
    %p362 = scmp.ne.s32.totalorder %s353, %s354
    %p363 = scmp.eq.s32.totalorder %s28, 0
    %p364 = por %p362, %p363
    %p365 = scmp.ne.s32.totalorder %s353, %s354
    %p366 = scmp.eq.s32.totalorder %s29, 1
    %p367 = por %p365, %p366
    %p369 = scmp.ne.s32.totalorder %s354, %s368
    %p370 = scmp.eq.s32.totalorder %s29, 0
    %p371 = por %p369, %p370
    %s373 = sadd.s32 %s372, 1
    %p376 = scmp.eq.s32.totalorder %s23, 1
    %p377 = scmp.ne.s32.totalorder %s372, %s374
    %p378 = scmp.eq.s32.totalorder %s23, 0
    %p379 = por %p377, %p378
    %p380 = scmp.ne.s32.totalorder %s372, %s374
    %p381 = scmp.eq.s32.totalorder %s28, 1
    %p382 = por %p380, %p381
    %p383 = scmp.ne.s32.totalorder %s374, %s375
    %p384 = scmp.eq.s32.totalorder %s28, 0
    %p385 = por %p383, %p384
    %p386 = scmp.ne.s32.totalorder %s374, %s375
    %p387 = scmp.eq.s32.totalorder %s29, 1
    %p388 = por %p386, %p387
    %p390 = scmp.ne.s32.totalorder %s375, %s389
    %p391 = scmp.eq.s32.totalorder %s29, 0
    %p392 = por %p390, %p391
    %s393 = ssub.s32 %s23, %s30
    %p394 = scmp.eq.s32.totalorder %s393, 0
    %s396 = sadd.s32 %s395, 1
    %s397 = scalar_select %p394, %s395, %s396
    %p400 = pneg %p394
    %p401 = scmp.eq.s32.totalorder %s23, 1
    %p402 = por %p400, %p401
    %p403 = scmp.ne.s32.totalorder %s395, %s398
    %p404 = scmp.eq.s32.totalorder %s23, 0
    %p405 = por %p403, %p404
    %p406 = scmp.ne.s32.totalorder %s395, %s398
    %p407 = scmp.eq.s32.totalorder %s28, 1
    %p408 = por %p406, %p407
    %p409 = scmp.ne.s32.totalorder %s398, %s399
    %p410 = scmp.eq.s32.totalorder %s28, 0
    %p411 = por %p409, %p410
    %p412 = scmp.ne.s32.totalorder %s398, %s399
    %p413 = scmp.eq.s32.totalorder %s29, 1
    %p414 = por %p412, %p413
    %p416 = scmp.ne.s32.totalorder %s399, %s415
    %p417 = scmp.eq.s32.totalorder %s29, 0
    %p418 = por %p416, %p417
    %p419 = scmp.le.s32.totalorder 1, %s23
    %p420 = scmp.lt.s32.totalorder %s23, 3
    %p421 = pnand %p419, %p420
    %p422 = pneg %p421
    // Predicated region
    $region9: #{fused_mbconv1d_model.1} parent=5 // pred_check
      _
    $region10: #{fused_mbconv1d_model.1} parent=5 // pred_check_branch
      %424 = sbr.rel (%p421) target = $region12
    $region11: #{fused_mbconv1d_model.1} parent=5 // pred_region
      %s425 = ssub.s32 %s23, 1
      // Predicated region
      $region13: #{fused_mbconv1d_model.1} parent=11 // pred_check
        %p426 = pneg %p70
      $region14: #{fused_mbconv1d_model.1} parent=11 // pred_check_branch
        %428 = sbr.rel (%p426) target = $region16
      $region15: #{fused_mbconv1d_model.1} parent=11 // pred_region
        _
      $region16: #{fused_mbconv1d_model.1} parent=11 // pred_fallthru
        _
      // Predicated region
      $region17: #{fused_mbconv1d_model.1} parent=11 // pred_check
        %p429 = pneg %p91
      $region18: #{fused_mbconv1d_model.1} parent=11 // pred_check_branch
        %431 = sbr.rel (%p429) target = $region20
      $region19: #{fused_mbconv1d_model.1} parent=11 // pred_region
        _
      $region20: #{fused_mbconv1d_model.1} parent=11 // pred_fallthru
        _
      // Predicated region
      $region21: #{fused_mbconv1d_model.1} parent=11 // pred_check
        %p432 = pneg %p112
      $region22: #{fused_mbconv1d_model.1} parent=11 // pred_check_branch
        %434 = sbr.rel (%p432) target = $region24
      $region23: #{fused_mbconv1d_model.1} parent=11 // pred_region
        _
      $region24: #{fused_mbconv1d_model.1} parent=11 // pred_fallthru
        _
      // Predicated region
      $region25: #{fused_mbconv1d_model.1} parent=11 // pred_check
        %p435 = pneg %p133
      $region26: #{fused_mbconv1d_model.1} parent=11 // pred_check_branch
        %437 = sbr.rel (%p435) target = $region28
      $region27: #{fused_mbconv1d_model.1} parent=11 // pred_region
        _
      $region28: #{fused_mbconv1d_model.1} parent=11 // pred_fallthru
        _
      // Predicated region
      $region29: #{fused_mbconv1d_model.1} parent=11 // pred_check
        %p438 = pneg %p154
      $region30: #{fused_mbconv1d_model.1} parent=11 // pred_check_branch
        %440 = sbr.rel (%p438) target = $region32
      $region31: #{fused_mbconv1d_model.1} parent=11 // pred_region
        _
      $region32: #{fused_mbconv1d_model.1} parent=11 // pred_fallthru
        _
      // Predicated region
      $region33: #{fused_mbconv1d_model.1} parent=11 // pred_check
        %p441 = pneg %p175
      $region34: #{fused_mbconv1d_model.1} parent=11 // pred_check_branch
        %443 = sbr.rel (%p441) target = $region36
      $region35: #{fused_mbconv1d_model.1} parent=11 // pred_region
        _
      $region36: #{fused_mbconv1d_model.1} parent=11 // pred_fallthru
        _
      // Predicated region
      $region37: #{fused_mbconv1d_model.1} parent=11 // pred_check
        %p444 = pneg %p196
      $region38: #{fused_mbconv1d_model.1} parent=11 // pred_check_branch
        %446 = sbr.rel (%p444) target = $region40
      $region39: #{fused_mbconv1d_model.1} parent=11 // pred_region
        _
      $region40: #{fused_mbconv1d_model.1} parent=11 // pred_fallthru
        _
      // Predicated region
      $region41: #{fused_mbconv1d_model.1} parent=11 // pred_check
        %p447 = pneg %p217
      $region42: #{fused_mbconv1d_model.1} parent=11 // pred_check_branch
        %449 = sbr.rel (%p447) target = $region44
      $region43: #{fused_mbconv1d_model.1} parent=11 // pred_region
        _
      $region44: #{fused_mbconv1d_model.1} parent=11 // pred_fallthru
        _
      // Predicated region
      $region45: #{fused_mbconv1d_model.1} parent=11 // pred_check
        %p450 = pneg %p238
      $region46: #{fused_mbconv1d_model.1} parent=11 // pred_check_branch
        %452 = sbr.rel (%p450) target = $region48
      $region47: #{fused_mbconv1d_model.1} parent=11 // pred_region
        _
      $region48: #{fused_mbconv1d_model.1} parent=11 // pred_fallthru
        _
      // Predicated region
      $region49: #{fused_mbconv1d_model.1} parent=11 // pred_check
        %p453 = pneg %p259
      $region50: #{fused_mbconv1d_model.1} parent=11 // pred_check_branch
        %455 = sbr.rel (%p453) target = $region52
      $region51: #{fused_mbconv1d_model.1} parent=11 // pred_region
        _
      $region52: #{fused_mbconv1d_model.1} parent=11 // pred_fallthru
        _
      // Predicated region
      $region53: #{fused_mbconv1d_model.1} parent=11 // pred_check
        %p456 = pneg %p280
      $region54: #{fused_mbconv1d_model.1} parent=11 // pred_check_branch
        %458 = sbr.rel (%p456) target = $region56
      $region55: #{fused_mbconv1d_model.1} parent=11 // pred_region
        _
      $region56: #{fused_mbconv1d_model.1} parent=11 // pred_fallthru
        _
      // Predicated region
      $region57: #{fused_mbconv1d_model.1} parent=11 // pred_check
        %p459 = pneg %p301
      $region58: #{fused_mbconv1d_model.1} parent=11 // pred_check_branch
        %461 = sbr.rel (%p459) target = $region60
      $region59: #{fused_mbconv1d_model.1} parent=11 // pred_region
        _
      $region60: #{fused_mbconv1d_model.1} parent=11 // pred_fallthru
        _
      // Predicated region
      $region61: #{fused_mbconv1d_model.1} parent=11 // pred_check
        %p462 = pneg %p322
      $region62: #{fused_mbconv1d_model.1} parent=11 // pred_check_branch
        %464 = sbr.rel (%p462) target = $region64
      $region63: #{fused_mbconv1d_model.1} parent=11 // pred_region
        _
      $region64: #{fused_mbconv1d_model.1} parent=11 // pred_fallthru
        _
      // Predicated region
      $region65: #{fused_mbconv1d_model.1} parent=11 // pred_check
        %p465 = pneg %p343
      $region66: #{fused_mbconv1d_model.1} parent=11 // pred_check_branch
        %467 = sbr.rel (%p465) target = $region68
      $region67: #{fused_mbconv1d_model.1} parent=11 // pred_region
        _
      $region68: #{fused_mbconv1d_model.1} parent=11 // pred_fallthru
        _
      // Predicated region
      $region69: #{fused_mbconv1d_model.1} parent=11 // pred_check
        %p468 = pneg %p364
      $region70: #{fused_mbconv1d_model.1} parent=11 // pred_check_branch
        %470 = sbr.rel (%p468) target = $region72
      $region71: #{fused_mbconv1d_model.1} parent=11 // pred_region
        _
      $region72: #{fused_mbconv1d_model.1} parent=11 // pred_fallthru
        _
      // Predicated region
      $region73: #{fused_mbconv1d_model.1} parent=11 // pred_check
        %p471 = pneg %p385
      $region74: #{fused_mbconv1d_model.1} parent=11 // pred_check_branch
        %473 = sbr.rel (%p471) target = $region76
      $region75: #{fused_mbconv1d_model.1} parent=11 // pred_region
        _
      $region76: #{fused_mbconv1d_model.1} parent=11 // pred_fallthru
        _
    $region12: #{fused_mbconv1d_model.1} parent=5 // pred_fallthru
      _
    %p474 = scmp.lt.s32.totalorder %s23, 2
    // Predicated region
    $region77: #{fused_mbconv1d_model.1} parent=5 // pred_check
      %p475 = pneg %p474
    $region78: #{fused_mbconv1d_model.1} parent=5 // pred_check_branch
      %477 = sbr.rel (%p475) target = $region80
    $region79: #{fused_mbconv1d_model.1} parent=5 // pred_region
      // Predicated region
      $region81: #{fused_mbconv1d_model.1} parent=79 // pred_check
        %p478 = pneg %p43
      $region82: #{fused_mbconv1d_model.1} parent=79 // pred_check_branch
        %480 = sbr.rel (%p478) target = $region84
      $region83: #{fused_mbconv1d_model.1} parent=79 // pred_region
        %p481 = scmp.lt.s32.totalorder %s23, 1
        %s482 = scalar_select %p481, %s23, 1
        %s483 = smul.addr %s482, 2
        %s484 = smul.addr %s483, 8
        %s485 = scalar_lea.vmem %s0, %s484
      $region84: #{fused_mbconv1d_model.1} parent=79 // pred_fallthru
        _
    $region80: #{fused_mbconv1d_model.1} parent=5 // pred_fallthru
      _
    %p486 = scmp.le.s32.totalorder 1, %s23
    %p487 = scmp.lt.s32.totalorder %s23, 3
    %p488 = pnand %p486, %p487
    %p489 = pneg %p488
    // Predicated region
    $region85: #{fused_mbconv1d_model.1} parent=5 // pred_check
      _
    $region86: #{fused_mbconv1d_model.1} parent=5 // pred_check_branch
      %491 = sbr.rel (%p488) target = $region88
    $region87: #{fused_mbconv1d_model.1} parent=5 // pred_region
      %s492 = ssub.s32 %s23, 1
      %p493 = scmp.lt.s32.totalorder %s28, 1
      %s494 = scalar_select %p493, %s28, 1
      %s495 = smul.addr %s494, 2
      %s496 = smul.addr %s495, 8
      %s497 = scalar_lea.vmem %s0, %s496
      %p498 = pneg %p49
      %p499 = pneg %p46
      %p500 = pneg %p70
      %p501 = pneg %p67
      %p502 = pneg %p91
      %p503 = pneg %p88
      %p504 = pneg %p112
      %p505 = pneg %p109
      %p506 = pneg %p133
      %p507 = pneg %p130
      %p508 = pneg %p154
      %p509 = pneg %p151
      %p510 = pneg %p175
      %p511 = pneg %p172
      %p512 = pneg %p196
      %p513 = pneg %p193
      %p514 = pneg %p217
      %p515 = pneg %p214
      %p516 = pneg %p238
      %p517 = pneg %p235
      %p518 = pneg %p259
      %p519 = pneg %p256
      %p520 = pneg %p280
      %p521 = pneg %p277
      %p522 = pneg %p301
      %p523 = pneg %p298
      %p524 = pneg %p322
      %p525 = pneg %p319
      %p526 = pneg %p343
      %p527 = pneg %p340
      %p528 = pneg %p364
      %p529 = pneg %p361
      %p530 = pneg %p385
      %p531 = pneg %p382
      %p532 = pneg %p411
      %p533 = pneg %p408
      %p534 = scmp.lt.s32.totalorder %s28, 1
      %s535 = scalar_select %p534, %s28, 1
      %s536 = smul.addr %s535, 2
      %s537 = smul.addr %s536, 8
      %s538 = scalar_lea.vmem %s17, %s537
      %p539 = scmp.lt.s32.totalorder %s28, 1
      %s540 = scalar_select %p539, %s28, 1
      %s541 = smul.addr %s540, 2
      %s542 = smul.addr %s541, 8
      %s543 = scalar_lea.vmem %s0, %s542
      %p544 = scmp.lt.s32.totalorder %s28, 1
      %s545 = scalar_select %p544, %s28, 1
      %s546 = smul.addr %s545, 2
      %s547 = smul.addr %s546, 8
      %s548 = scalar_lea.vmem %s17, %s547
      %549 = vst [vmem:[#allocation2] sm:$0xff] 0.0
      %550 = vst [vmem:[#allocation2 + $0x8] sm:$0xff] 0.0
      %551 = vst [vmem:[#allocation2 + $0x10] sm:$0xf] 0.0
      %v552 = vld [vmem:[%s543] sm:$0xff]
      %v553 = vld [vmem:[%s543 + $0x8] sm:$0xff]
      %vm554 = vcmask 31744
      %555 = vst.msk [vmem:[#allocation2 + $0x2] sm:$0xff] %vm554, %v552
      %556 = vst.msk [vmem:[#allocation2 + $0xa] sm:$0xff] %vm554, %v553
      %v557 = vld [vmem:[#allocation2] sm:$0xff]
      %v558 = vld [vmem:[#allocation2 + $0x8] sm:$0xff]
      %v559 = vld [vmem:[#allocation2 + $0x10] sm:$0xf]
      %v560 = vld [vmem:[%s1] sm:$0xff]
      %v561 = vld [vmem:[%s1 + $0x8] sm:$0xff]
      %v562 = vld [vmem:[%s1 + $0x10] sm:$0xff]
      %v563 = vld [vmem:[%s1 + $0x18] sm:$0xff]
      %v564 = vld [vmem:[%s1 + $0x20] sm:$0xff]
      %v565 = vld [vmem:[%s1 + $0x28] sm:$0xff]
      %v566 = vld [vmem:[%s1 + $0x30] sm:$0xff]
      %v567 = vld [vmem:[%s1 + $0x38] sm:$0xff]
      %v568 = vld [vmem:[%s1 + $0x40] sm:$0xff]
      %v569 = vld [vmem:[%s1 + $0x48] sm:$0xff]
      %v570 = vld [vmem:[%s1 + $0x50] sm:$0xff]
      %v571 = vld [vmem:[%s1 + $0x58] sm:$0xff]
      %v572 = vld [vmem:[%s1 + $0x60] sm:$0xff]
      %v573 = vld [vmem:[%s1 + $0x68] sm:$0xff]
      %v574 = vld [vmem:[%s1 + $0x70] sm:$0xff]
      %v575 = vld [vmem:[%s1 + $0x78] sm:$0xff]
      %s576 = scalar_lea.vmem %s1, 128
      %v577 = vld [vmem:[%s576] sm:$0xff]
      %v578 = vld [vmem:[%s576 + $0x8] sm:$0xff]
      %v579 = vld [vmem:[%s576 + $0x10] sm:$0xff]
      %v580 = vld [vmem:[%s576 + $0x18] sm:$0xff]
      %v581 = vld [vmem:[%s576 + $0x20] sm:$0xff]
      %v582 = vld [vmem:[%s576 + $0x28] sm:$0xff]
      %v583 = vld [vmem:[%s576 + $0x30] sm:$0xff]
      %v584 = vld [vmem:[%s576 + $0x38] sm:$0xff]
      %v585 = vld [vmem:[%s576 + $0x40] sm:$0xff]
      %v586 = vld [vmem:[%s576 + $0x48] sm:$0xff]
      %v587 = vld [vmem:[%s576 + $0x50] sm:$0xff]
      %v588 = vld [vmem:[%s576 + $0x58] sm:$0xff]
      %v589 = vld [vmem:[%s576 + $0x60] sm:$0xff]
      %v590 = vld [vmem:[%s576 + $0x68] sm:$0xff]
      %v591 = vld [vmem:[%s576 + $0x70] sm:$0xff]
      %v592 = vld [vmem:[%s576 + $0x78] sm:$0xff]
      %vm596 = vcmask 1046528
      %v597 = vrot.slane %v557, 1
      %v598 = vrot.slane %v558, 1
      %v599 = vsel %vm596, %v597, %v598
      %v600 = vrot.slane %v559, 1
      %v601 = vsel %vm596, %v598, %v600
      %605 = vmatprep.subr.mxu0 0.0
      %606 = vmatpush1.msra.mxu0 %v577
      %607 = vmatprep.subr.mxu0 0.0
      %608 = vmatpush1.msra.mxu0 %v578
      %609 = vmatprep.subr.mxu0 0.0
      %610 = vmatpush1.msra.mxu0 %v579
      %611 = vmatprep.subr.mxu0 0.0
      %612 = vmatpush1.msra.mxu0 %v580
      %613 = vmatprep.subr.mxu0 0.0
      %614 = vmatpush1.msra.mxu0 %v581
      %615 = vmatprep.subr.mxu0 0.0
      %616 = vmatpush1.msra.mxu0 %v582
      %617 = vmatprep.subr.mxu0 0.0
      %618 = vmatpush1.msra.mxu0 %v583
      %619 = vmatprep.subr.mxu0 0.0
      %620 = vmatpush1.msra.mxu0 %v584
      %621 = vmatprep.subr.mxu0 0.0
      %622 = vmatpush1.msra.mxu0 %v585
      %623 = vmatprep.subr.mxu0 0.0
      %624 = vmatpush1.msra.mxu0 %v586
      %625 = vmatprep.subr.mxu0 0.0
      %626 = vmatpush1.msra.mxu0 %v587
      %627 = vmatprep.subr.mxu0 0.0
      %628 = vmatpush1.msra.mxu0 %v588
      %629 = vmatprep.subr.mxu0 0.0
      %630 = vmatpush1.msra.mxu0 %v589
      %631 = vmatprep.subr.mxu0 0.0
      %632 = vmatpush1.msra.mxu0 %v590
      %633 = vmatprep.subr.mxu0 0.0
      %634 = vmatpush1.msra.mxu0 %v591
      %635 = vmatprep.subr.mxu0 0.0
      %636 = vmatpush1.msra.mxu0 %v592
      %637 = vmatprep.subr.mxu0 0.0
      %638 = vmatpush1.msra.mxu0 0.0
      %639 = vmatprep.subr.mxu0 0.0
      %640 = vmatpush1.msra.mxu0 0.0
      %641 = vmatprep.subr.mxu0 0.0
      %642 = vmatpush1.msra.mxu0 0.0
      %643 = vmatprep.subr.mxu0 0.0
      %644 = vmatpush1.msra.mxu0 0.0
      %645 = vmatprep.subr.mxu0 0.0
      %646 = vmatpush1.msra.mxu0 0.0
      %647 = vmatprep.subr.mxu0 0.0
      %648 = vmatpush1.msra.mxu0 0.0
      %649 = vmatprep.subr.mxu0 0.0
      %650 = vmatpush1.msra.mxu0 0.0
      %651 = vmatprep.subr.mxu0 0.0
      %652 = vmatpush1.msra.mxu0 0.0
      %653 = vmatprep.subr.mxu0 0.0
      %654 = vmatpush1.msra.mxu0 0.0
      %655 = vmatprep.subr.mxu0 0.0
      %656 = vmatpush1.msra.mxu0 0.0
      %657 = vmatprep.subr.mxu0 0.0
      %658 = vmatpush1.msra.mxu0 0.0
      %659 = vmatprep.subr.mxu0 0.0
      %660 = vmatpush1.msra.mxu0 0.0
      %661 = vmatprep.subr.mxu0 0.0
      %662 = vmatpush1.msra.mxu0 0.0
      %663 = vmatprep.subr.mxu0 0.0
      %664 = vmatpush1.msra.mxu0 0.0
      %665 = vmatprep.subr.mxu0 0.0
      %666 = vmatpush1.msra.mxu0 0.0
      %667 = vmatprep.subr.mxu0 0.0
      %668 = vmatpush1.msra.mxu0 0.0
      %669 = vmatprep.mubr.f32.mxu0 0.0
      %670 = vmatmul.mubr.f32.gmra.mrb[0].mxu0 %v599
      %v671 = vpop.f32.mrb[0].mxu0
      %v672 = vadd.f32 0.0, %v671
      %v673 = vpop.f32.mrb[0].mxu0
      %674 = vmatprep.mubr.f32.mxu0 0.0
      %675 = vmatmul.mubr.f32.gmra.mrb[0].mxu0 %v601
      %v676 = vpop.f32.mrb[0].mxu0
      %v677 = vadd.f32 0.0, %v676
      %v678 = vpop.f32.mrb[0].mxu0
      %679 = vmatprep.mubr.f32.mxu0 0.0
      %680 = vmatmul.mubr.f32.gmra.mrb[0].mxu0 %v600
      %v681 = vpop.f32.mrb[0].mxu0
      %v682 = vadd.f32 0.0, %v681
      %v683 = vpop.f32.mrb[0].mxu0
      %684 = vdwg.mxu0
      %685 = vmatprep.subr.mxu0 0.0
      %686 = vmatpush1.msra.mxu0 %v560
      %687 = vmatprep.subr.mxu0 0.0
      %688 = vmatpush1.msra.mxu0 %v561
      %689 = vmatprep.subr.mxu0 0.0
      %690 = vmatpush1.msra.mxu0 %v562
      %691 = vmatprep.subr.mxu0 0.0
      %692 = vmatpush1.msra.mxu0 %v563
      %693 = vmatprep.subr.mxu0 0.0
      %694 = vmatpush1.msra.mxu0 %v564
      %695 = vmatprep.subr.mxu0 0.0
      %696 = vmatpush1.msra.mxu0 %v565
      %697 = vmatprep.subr.mxu0 0.0
      %698 = vmatpush1.msra.mxu0 %v566
      %699 = vmatprep.subr.mxu0 0.0
      %700 = vmatpush1.msra.mxu0 %v567
      %701 = vmatprep.subr.mxu0 0.0
      %702 = vmatpush1.msra.mxu0 %v568
      %703 = vmatprep.subr.mxu0 0.0
      %704 = vmatpush1.msra.mxu0 %v569
      %705 = vmatprep.subr.mxu0 0.0
      %706 = vmatpush1.msra.mxu0 %v570
      %707 = vmatprep.subr.mxu0 0.0
      %708 = vmatpush1.msra.mxu0 %v571
      %709 = vmatprep.subr.mxu0 0.0
      %710 = vmatpush1.msra.mxu0 %v572
      %711 = vmatprep.subr.mxu0 0.0
      %712 = vmatpush1.msra.mxu0 %v573
      %713 = vmatprep.subr.mxu0 0.0
      %714 = vmatpush1.msra.mxu0 %v574
      %715 = vmatprep.subr.mxu0 0.0
      %716 = vmatpush1.msra.mxu0 %v575
      %717 = vmatprep.subr.mxu0 0.0
      %718 = vmatpush1.msra.mxu0 0.0
      %719 = vmatprep.subr.mxu0 0.0
      %720 = vmatpush1.msra.mxu0 0.0
      %721 = vmatprep.subr.mxu0 0.0
      %722 = vmatpush1.msra.mxu0 0.0
      %723 = vmatprep.subr.mxu0 0.0
      %724 = vmatpush1.msra.mxu0 0.0
      %725 = vmatprep.subr.mxu0 0.0
      %726 = vmatpush1.msra.mxu0 0.0
      %727 = vmatprep.subr.mxu0 0.0
      %728 = vmatpush1.msra.mxu0 0.0
      %729 = vmatprep.subr.mxu0 0.0
      %730 = vmatpush1.msra.mxu0 0.0
      %731 = vmatprep.subr.mxu0 0.0
      %732 = vmatpush1.msra.mxu0 0.0
      %733 = vmatprep.subr.mxu0 0.0
      %734 = vmatpush1.msra.mxu0 0.0
      %735 = vmatprep.subr.mxu0 0.0
      %736 = vmatpush1.msra.mxu0 0.0
      %737 = vmatprep.subr.mxu0 0.0
      %738 = vmatpush1.msra.mxu0 0.0
      %739 = vmatprep.subr.mxu0 0.0
      %740 = vmatpush1.msra.mxu0 0.0
      %741 = vmatprep.subr.mxu0 0.0
      %742 = vmatpush1.msra.mxu0 0.0
      %743 = vmatprep.subr.mxu0 0.0
      %744 = vmatpush1.msra.mxu0 0.0
      %745 = vmatprep.subr.mxu0 0.0
      %746 = vmatpush1.msra.mxu0 0.0
      %747 = vmatprep.subr.mxu0 0.0
      %748 = vmatpush1.msra.mxu0 0.0
      %749 = vmatprep.mubr.f32.mxu0 0.0
      %750 = vmatmul.mubr.f32.gmra.mrb[0].mxu0 %v557
      %v751 = vpop.f32.mrb[0].mxu0
      %v752 = vadd.f32 %v672, %v751
      %v753 = vpop.f32.mrb[0].mxu0
      %754 = vmatprep.mubr.f32.mxu0 0.0
      %755 = vmatmul.mubr.f32.gmra.mrb[0].mxu0 %v558
      %v756 = vpop.f32.mrb[0].mxu0
      %v757 = vadd.f32 %v677, %v756
      %v758 = vpop.f32.mrb[0].mxu0
      %759 = vmatprep.mubr.f32.mxu0 0.0
      %760 = vmatmul.mubr.f32.gmra.mrb[0].mxu0 %v559
      %v761 = vpop.f32.mrb[0].mxu0
      %v762 = vadd.f32 %v682, %v761
      %v763 = vpop.f32.mrb[0].mxu0
      %764 = vdwg.mxu0
      %s765 = scalar_lea.vmem %s1, 256
      %v766 = vld [vmem:[%s765] sm:$0xff]
      %v767 = vld [vmem:[%s765 + $0x8] sm:$0xff]
      %v768 = vld [vmem:[%s765 + $0x10] sm:$0xff]
      %v769 = vld [vmem:[%s765 + $0x18] sm:$0xff]
      %v770 = vld [vmem:[%s765 + $0x20] sm:$0xff]
      %v771 = vld [vmem:[%s765 + $0x28] sm:$0xff]
      %v772 = vld [vmem:[%s765 + $0x30] sm:$0xff]
      %v773 = vld [vmem:[%s765 + $0x38] sm:$0xff]
      %v774 = vld [vmem:[%s765 + $0x40] sm:$0xff]
      %v775 = vld [vmem:[%s765 + $0x48] sm:$0xff]
      %v776 = vld [vmem:[%s765 + $0x50] sm:$0xff]
      %v777 = vld [vmem:[%s765 + $0x58] sm:$0xff]
      %v778 = vld [vmem:[%s765 + $0x60] sm:$0xff]
      %v779 = vld [vmem:[%s765 + $0x68] sm:$0xff]
      %v780 = vld [vmem:[%s765 + $0x70] sm:$0xff]
      %v781 = vld [vmem:[%s765 + $0x78] sm:$0xff]
      %vm782 = vcmask 1045504
      %v783 = vrot.slane %v557, 2
      %v784 = vrot.slane %v558, 2
      %v785 = vsel %vm782, %v783, %v784
      %v786 = vrot.slane %v559, 2
      %v787 = vsel %vm782, %v784, %v786
      %791 = vmatprep.subr.mxu0 0.0
      %792 = vmatpush1.msra.mxu0 %v766
      %793 = vmatprep.subr.mxu0 0.0
      %794 = vmatpush1.msra.mxu0 %v767
      %795 = vmatprep.subr.mxu0 0.0
      %796 = vmatpush1.msra.mxu0 %v768
      %797 = vmatprep.subr.mxu0 0.0
      %798 = vmatpush1.msra.mxu0 %v769
      %799 = vmatprep.subr.mxu0 0.0
      %800 = vmatpush1.msra.mxu0 %v770
      %801 = vmatprep.subr.mxu0 0.0
      %802 = vmatpush1.msra.mxu0 %v771
      %803 = vmatprep.subr.mxu0 0.0
      %804 = vmatpush1.msra.mxu0 %v772
      %805 = vmatprep.subr.mxu0 0.0
      %806 = vmatpush1.msra.mxu0 %v773
      %807 = vmatprep.subr.mxu0 0.0
      %808 = vmatpush1.msra.mxu0 %v774
      %809 = vmatprep.subr.mxu0 0.0
      %810 = vmatpush1.msra.mxu0 %v775
      %811 = vmatprep.subr.mxu0 0.0
      %812 = vmatpush1.msra.mxu0 %v776
      %813 = vmatprep.subr.mxu0 0.0
      %814 = vmatpush1.msra.mxu0 %v777
      %815 = vmatprep.subr.mxu0 0.0
      %816 = vmatpush1.msra.mxu0 %v778
      %817 = vmatprep.subr.mxu0 0.0
      %818 = vmatpush1.msra.mxu0 %v779
      %819 = vmatprep.subr.mxu0 0.0
      %820 = vmatpush1.msra.mxu0 %v780
      %821 = vmatprep.subr.mxu0 0.0
      %822 = vmatpush1.msra.mxu0 %v781
      %823 = vmatprep.subr.mxu0 0.0
      %824 = vmatpush1.msra.mxu0 0.0
      %825 = vmatprep.subr.mxu0 0.0
      %826 = vmatpush1.msra.mxu0 0.0
      %827 = vmatprep.subr.mxu0 0.0
      %828 = vmatpush1.msra.mxu0 0.0
      %829 = vmatprep.subr.mxu0 0.0
      %830 = vmatpush1.msra.mxu0 0.0
      %831 = vmatprep.subr.mxu0 0.0
      %832 = vmatpush1.msra.mxu0 0.0
      %833 = vmatprep.subr.mxu0 0.0
      %834 = vmatpush1.msra.mxu0 0.0
      %835 = vmatprep.subr.mxu0 0.0
      %836 = vmatpush1.msra.mxu0 0.0
      %837 = vmatprep.subr.mxu0 0.0
      %838 = vmatpush1.msra.mxu0 0.0
      %839 = vmatprep.subr.mxu0 0.0
      %840 = vmatpush1.msra.mxu0 0.0
      %841 = vmatprep.subr.mxu0 0.0
      %842 = vmatpush1.msra.mxu0 0.0
      %843 = vmatprep.subr.mxu0 0.0
      %844 = vmatpush1.msra.mxu0 0.0
      %845 = vmatprep.subr.mxu0 0.0
      %846 = vmatpush1.msra.mxu0 0.0
      %847 = vmatprep.subr.mxu0 0.0
      %848 = vmatpush1.msra.mxu0 0.0
      %849 = vmatprep.subr.mxu0 0.0
      %850 = vmatpush1.msra.mxu0 0.0
      %851 = vmatprep.subr.mxu0 0.0
      %852 = vmatpush1.msra.mxu0 0.0
      %853 = vmatprep.subr.mxu0 0.0
      %854 = vmatpush1.msra.mxu0 0.0
      %855 = vmatprep.mubr.f32.mxu0 0.0
      %856 = vmatmul.mubr.f32.gmra.mrb[0].mxu0 %v785
      %v857 = vpop.f32.mrb[0].mxu0
      %v858 = vadd.f32 0.0, %v857
      %v859 = vpop.f32.mrb[0].mxu0
      %860 = vmatprep.mubr.f32.mxu0 0.0
      %861 = vmatmul.mubr.f32.gmra.mrb[0].mxu0 %v787
      %v862 = vpop.f32.mrb[0].mxu0
      %v863 = vadd.f32 0.0, %v862
      %v864 = vpop.f32.mrb[0].mxu0
      %865 = vmatprep.mubr.f32.mxu0 0.0
      %866 = vmatmul.mubr.f32.gmra.mrb[0].mxu0 %v786
      %v867 = vpop.f32.mrb[0].mxu0
      %v868 = vadd.f32 0.0, %v867
      %v869 = vpop.f32.mrb[0].mxu0
      %870 = vdwg.mxu0
      %v871 = vadd.f32 %v752, %v858
      %v872 = vadd.f32 %v757, %v863
      %v873 = vadd.f32 %v762, %v868
      %v874 = vld [vmem:[%s2] sm:$0x1]
      %v876 = vlaneseq
      %v877 = vshrl.u32 %v876, 7
      %v878 = vsub.s32 0, %v877
      %v879 = vrot.slane %v874, %v878
      %v881 = vadd.f32 %v871, %v879
      %v882 = vadd.f32 %v872, %v879
      %v883 = vadd.f32 %v873, %v879
      %v884 = vld [vmem:[%s3] sm:$0x1]
      %v885 = vld [vmem:[%s4] sm:$0x1]
      %886 = vadd.xlane.f32.xlu0 %v881
      %v887 = vpop.xlane.xlu0 %886
      %888 = vadd.xlane.f32.xlu0 %v882
      %v889 = vpop.xlane.xlu0 %888
      %vm890 = vcmask 1041408
      %v891 = vsel %vm890, %v883, 0.0
      %892 = vadd.xlane.f32.xlu0 %v891
      %v893 = vpop.xlane.xlu0 %892
      %v894 = vmul.f32 %v887, 0.125
      %v895 = vmul.f32 %v889, 0.125
      %v896 = vmul.f32 %v893, 0.125
      %v897 = vmul.f32 %v881, %v881
      %v898 = vmul.f32 %v882, %v882
      %v899 = vmul.f32 %v883, %v883
      %900 = vadd.xlane.f32.xlu0 %v897
      %v901 = vpop.xlane.xlu0 %900
      %902 = vadd.xlane.f32.xlu0 %v898
      %v903 = vpop.xlane.xlu0 %902
      %v904 = vsel %vm890, %v899, 0.0
      %905 = vadd.xlane.f32.xlu0 %v904
      %v906 = vpop.xlane.xlu0 %905
      %v907 = vmul.f32 %v901, 0.125
      %v908 = vmul.f32 %v903, 0.125
      %v909 = vmul.f32 %v906, 0.125
      %v910 = vmul.f32 %v894, %v894
      %v911 = vmul.f32 %v895, %v895
      %v912 = vmul.f32 %v896, %v896
      %v913 = vsub.f32 %v907, %v910
      %v914 = vsub.f32 %v908, %v911
      %v915 = vsub.f32 %v909, %v912
      %v916 = vmax.f32 %v913, 0.0
      %v917 = vmax.f32 %v914, 0.0
      %v918 = vmax.f32 %v915, 0.0
      %v919 = vsub.f32 %v881, %v894
      %v920 = vsub.f32 %v882, %v895
      %v921 = vsub.f32 %v883, %v896
      %v922 = vadd.f32 %v916, 1e-05
      %v923 = vadd.f32 %v917, 1e-05
      %v924 = vadd.f32 %v918, 1e-05
      %v925 = vrsqrt.pop %v922
      %v926 = vrsqrt.pop %v923
      %v927 = vrsqrt.pop %v924
      %v928 = vmul.f32 %v919, %v925
      %v929 = vmul.f32 %v920, %v926
      %v930 = vmul.f32 %v921, %v927
      %v932 = vlaneseq
      %v933 = vshrl.u32 %v932, 7
      %v934 = vsub.s32 0, %v933
      %v935 = vrot.slane %v884, %v934
      %v937 = vmul.f32 %v928, %v935
      %v938 = vmul.f32 %v929, %v935
      %v939 = vmul.f32 %v930, %v935
      %v941 = vlaneseq
      %v942 = vshrl.u32 %v941, 7
      %v943 = vsub.s32 0, %v942
      %v944 = vrot.slane %v885, %v943
      %v946 = vadd.f32 %v937, %v944
      %v947 = vadd.f32 %v938, %v944
      %v948 = vadd.f32 %v939, %v944
      %v949 = vld [vmem:[%s5] sm:$0xff]
      %v950 = vld [vmem:[%s5 + $0x8] sm:$0xff]
      %v951 = vld [vmem:[%s5 + $0x10] sm:$0xff]
      %v952 = vld [vmem:[%s5 + $0x18] sm:$0xff]
      %v953 = vld [vmem:[%s5 + $0x20] sm:$0xff]
      %v954 = vld [vmem:[%s5 + $0x28] sm:$0xff]
      %v955 = vld [vmem:[%s5 + $0x30] sm:$0xff]
      %v956 = vld [vmem:[%s5 + $0x38] sm:$0xff]
      %v957 = vld [vmem:[%s5 + $0x40] sm:$0xff]
      %v958 = vld [vmem:[%s5 + $0x48] sm:$0xff]
      %v959 = vld [vmem:[%s5 + $0x50] sm:$0xff]
      %v960 = vld [vmem:[%s5 + $0x58] sm:$0xff]
      %v961 = vld [vmem:[%s5 + $0x60] sm:$0xff]
      %v962 = vld [vmem:[%s5 + $0x68] sm:$0xff]
      %v963 = vld [vmem:[%s5 + $0x70] sm:$0xff]
      %v964 = vld [vmem:[%s5 + $0x78] sm:$0xff]
      %v965 = vld [vmem:[%s6] sm:$0x1]
      %v967 = vlaneseq
      %v968 = vshrl.u32 %v967, 7
      %v969 = vsub.s32 0, %v968
      %v970 = vrot.slane %v965, %v969
      %972 = vmatprep.subr.mxu0 0.0
      %973 = vmatpush1.msra.mxu0 %v949
      %974 = vmatprep.subr.mxu0 0.0
      %975 = vmatpush1.msra.mxu0 %v950
      %976 = vmatprep.subr.mxu0 0.0
      %977 = vmatpush1.msra.mxu0 %v951
      %978 = vmatprep.subr.mxu0 0.0
      %979 = vmatpush1.msra.mxu0 %v952
      %980 = vmatprep.subr.mxu0 0.0
      %981 = vmatpush1.msra.mxu0 %v953
      %982 = vmatprep.subr.mxu0 0.0
      %983 = vmatpush1.msra.mxu0 %v954
      %984 = vmatprep.subr.mxu0 0.0
      %985 = vmatpush1.msra.mxu0 %v955
      %986 = vmatprep.subr.mxu0 0.0
      %987 = vmatpush1.msra.mxu0 %v956
      %988 = vmatprep.subr.mxu0 0.0
      %989 = vmatpush1.msra.mxu0 %v957
      %990 = vmatprep.subr.mxu0 0.0
      %991 = vmatpush1.msra.mxu0 %v958
      %992 = vmatprep.subr.mxu0 0.0
      %993 = vmatpush1.msra.mxu0 %v959
      %994 = vmatprep.subr.mxu0 0.0
      %995 = vmatpush1.msra.mxu0 %v960
      %996 = vmatprep.subr.mxu0 0.0
      %997 = vmatpush1.msra.mxu0 %v961
      %998 = vmatprep.subr.mxu0 0.0
      %999 = vmatpush1.msra.mxu0 %v962
      %1000 = vmatprep.subr.mxu0 0.0
      %1001 = vmatpush1.msra.mxu0 %v963
      %1002 = vmatprep.subr.mxu0 0.0
      %1003 = vmatpush1.msra.mxu0 %v964
      %1004 = vmatprep.subr.mxu0 0.0
      %1005 = vmatpush1.msra.mxu0 0.0
      %1006 = vmatprep.subr.mxu0 0.0
      %1007 = vmatpush1.msra.mxu0 0.0
      %1008 = vmatprep.subr.mxu0 0.0
      %1009 = vmatpush1.msra.mxu0 0.0
      %1010 = vmatprep.subr.mxu0 0.0
      %1011 = vmatpush1.msra.mxu0 0.0
      %1012 = vmatprep.subr.mxu0 0.0
      %1013 = vmatpush1.msra.mxu0 0.0
      %1014 = vmatprep.subr.mxu0 0.0
      %1015 = vmatpush1.msra.mxu0 0.0
      %1016 = vmatprep.subr.mxu0 0.0
      %1017 = vmatpush1.msra.mxu0 0.0
      %1018 = vmatprep.subr.mxu0 0.0
      %1019 = vmatpush1.msra.mxu0 0.0
      %1020 = vmatprep.subr.mxu0 0.0
      %1021 = vmatpush1.msra.mxu0 0.0
      %1022 = vmatprep.subr.mxu0 0.0
      %1023 = vmatpush1.msra.mxu0 0.0
      %1024 = vmatprep.subr.mxu0 0.0
      %1025 = vmatpush1.msra.mxu0 0.0
      %1026 = vmatprep.subr.mxu0 0.0
      %1027 = vmatpush1.msra.mxu0 0.0
      %1028 = vmatprep.subr.mxu0 0.0
      %1029 = vmatpush1.msra.mxu0 0.0
      %1030 = vmatprep.subr.mxu0 0.0
      %1031 = vmatpush1.msra.mxu0 0.0
      %1032 = vmatprep.subr.mxu0 0.0
      %1033 = vmatpush1.msra.mxu0 0.0
      %1034 = vmatprep.subr.mxu0 0.0
      %1035 = vmatpush1.msra.mxu0 0.0
      %1036 = vmatprep.mubr.f32.mxu0 0.0
      %1037 = vmatmul.mubr.f32.gmra.mrb[0].mxu0 %v946
      %v1038 = vpop.f32.mrb[0].mxu0
      %v1039 = vadd.f32 %v970, %v1038
      %v1040 = vpop.f32.mrb[0].mxu0
      %1041 = vmatprep.mubr.f32.mxu0 0.0
      %1042 = vmatmul.mubr.f32.gmra.mrb[0].mxu0 %v947
      %v1043 = vpop.f32.mrb[0].mxu0
      %v1044 = vadd.f32 %v970, %v1043
      %v1045 = vpop.f32.mrb[0].mxu0
      %1046 = vmatprep.mubr.f32.mxu0 0.0
      %1047 = vmatmul.mubr.f32.gmra.mrb[0].mxu0 %v948
      %v1048 = vpop.f32.mrb[0].mxu0
      %v1049 = vadd.f32 %v970, %v1048
      %v1050 = vpop.f32.mrb[0].mxu0
      %1051 = vdwg.mxu0
      %v1052 = vld [vmem:[%s7] sm:$0x1]
      %v1053 = vld [vmem:[%s8] sm:$0x1]
      %1054 = vadd.xlane.f32.xlu0 %v1039
      %v1055 = vpop.xlane.xlu0 %1054
      %1056 = vadd.xlane.f32.xlu0 %v1044
      %v1057 = vpop.xlane.xlu0 %1056
      %v1058 = vsel %vm890, %v1049, 0.0
      %1059 = vadd.xlane.f32.xlu0 %v1058
      %v1060 = vpop.xlane.xlu0 %1059
      %v1061 = vmul.f32 %v1055, 0.25
      %v1062 = vmul.f32 %v1057, 0.25
      %v1063 = vmul.f32 %v1060, 0.25
      %v1064 = vmul.f32 %v1039, %v1039
      %v1065 = vmul.f32 %v1044, %v1044
      %v1066 = vmul.f32 %v1049, %v1049
      %1067 = vadd.xlane.f32.xlu0 %v1064
      %v1068 = vpop.xlane.xlu0 %1067
      %1069 = vadd.xlane.f32.xlu0 %v1065
      %v1070 = vpop.xlane.xlu0 %1069
      %v1071 = vsel %vm890, %v1066, 0.0
      %1072 = vadd.xlane.f32.xlu0 %v1071
      %v1073 = vpop.xlane.xlu0 %1072
      %v1074 = vmul.f32 %v1068, 0.25
      %v1075 = vmul.f32 %v1070, 0.25
      %v1076 = vmul.f32 %v1073, 0.25
      %v1077 = vmul.f32 %v1061, %v1061
      %v1078 = vmul.f32 %v1062, %v1062
      %v1079 = vmul.f32 %v1063, %v1063
      %v1080 = vsub.f32 %v1074, %v1077
      %v1081 = vsub.f32 %v1075, %v1078
      %v1082 = vsub.f32 %v1076, %v1079
      %v1083 = vmax.f32 %v1080, 0.0
      %v1084 = vmax.f32 %v1081, 0.0
      %v1085 = vmax.f32 %v1082, 0.0
      %v1086 = vsub.f32 %v1039, %v1061
      %v1087 = vsub.f32 %v1044, %v1062
      %v1088 = vsub.f32 %v1049, %v1063
      %v1089 = vadd.f32 %v1083, 1e-05
      %v1090 = vadd.f32 %v1084, 1e-05
      %v1091 = vadd.f32 %v1085, 1e-05
      %v1092 = vrsqrt.pop %v1089
      %v1093 = vrsqrt.pop %v1090
      %v1094 = vrsqrt.pop %v1091
      %v1095 = vmul.f32 %v1086, %v1092
      %v1096 = vmul.f32 %v1087, %v1093
      %v1097 = vmul.f32 %v1088, %v1094
      %v1099 = vlaneseq
      %v1100 = vshrl.u32 %v1099, 7
      %v1101 = vsub.s32 0, %v1100
      %v1102 = vrot.slane %v1052, %v1101
      %v1104 = vmul.f32 %v1095, %v1102
      %v1105 = vmul.f32 %v1096, %v1102
      %v1106 = vmul.f32 %v1097, %v1102
      %v1108 = vlaneseq
      %v1109 = vshrl.u32 %v1108, 7
      %v1110 = vsub.s32 0, %v1109
      %v1111 = vrot.slane %v1053, %v1110
      %v1113 = vadd.f32 %v1104, %v1111
      %v1114 = vadd.f32 %v1105, %v1111
      %v1115 = vadd.f32 %v1106, %v1111
      %v1116 = vadd.f32 %v1113, %v599
      %v1117 = vadd.f32 %v1114, %v601
      %v1118 = vadd.f32 %v1115, %v600
      %v1119 = vlaneseq
      %v1120 = vshrl.u32 %v1119, 7
      %v1121 = vadd.s32 %v1120, 8
      %v1122 = vadd.s32 %v1120, 16
      %vm1123 = vcmp.ge.s32.totalorder %v1120, 1
      %vm1124 = vcmp.ge.s32.totalorder %v1121, 1
      %vm1125 = vcmp.ge.s32.totalorder %v1122, 1
      %vm1126 = vcmp.lt.s32.totalorder %v1120, 17
      %vm1127 = vcmp.lt.s32.totalorder %v1121, 17
      %vm1128 = vcmp.lt.s32.totalorder %v1122, 17
      %vm1129 = vmand %vm1123, %vm1126
      %vm1130 = vmand %vm1124, %vm1127
      %vm1131 = vmand %vm1125, %vm1128
      %v1132 = vsel %vm1129, %v1116, 0.0
      %v1133 = vsel %vm1130, %v1117, 0.0
      %v1134 = vsel %vm1131, %v1118, 0.0
      %v1135 = vld [vmem:[%s9] sm:$0xff]
      %v1136 = vld [vmem:[%s9 + $0x8] sm:$0xff]
      %v1137 = vld [vmem:[%s9 + $0x10] sm:$0xff]
      %v1138 = vld [vmem:[%s9 + $0x18] sm:$0xff]
      %v1139 = vld [vmem:[%s9 + $0x20] sm:$0xff]
      %v1140 = vld [vmem:[%s9 + $0x28] sm:$0xff]
      %v1141 = vld [vmem:[%s9 + $0x30] sm:$0xff]
      %v1142 = vld [vmem:[%s9 + $0x38] sm:$0xff]
      %v1143 = vld [vmem:[%s9 + $0x40] sm:$0xff]
      %v1144 = vld [vmem:[%s9 + $0x48] sm:$0xff]
      %v1145 = vld [vmem:[%s9 + $0x50] sm:$0xff]
      %v1146 = vld [vmem:[%s9 + $0x58] sm:$0xff]
      %v1147 = vld [vmem:[%s9 + $0x60] sm:$0xff]
      %v1148 = vld [vmem:[%s9 + $0x68] sm:$0xff]
      %v1149 = vld [vmem:[%s9 + $0x70] sm:$0xff]
      %v1150 = vld [vmem:[%s9 + $0x78] sm:$0xff]
      %s1151 = scalar_lea.vmem %s9, 128
      %v1152 = vld [vmem:[%s1151] sm:$0xff]
      %v1153 = vld [vmem:[%s1151 + $0x8] sm:$0xff]
      %v1154 = vld [vmem:[%s1151 + $0x10] sm:$0xff]
      %v1155 = vld [vmem:[%s1151 + $0x18] sm:$0xff]
      %v1156 = vld [vmem:[%s1151 + $0x20] sm:$0xff]
      %v1157 = vld [vmem:[%s1151 + $0x28] sm:$0xff]
      %v1158 = vld [vmem:[%s1151 + $0x30] sm:$0xff]
      %v1159 = vld [vmem:[%s1151 + $0x38] sm:$0xff]
      %v1160 = vld [vmem:[%s1151 + $0x40] sm:$0xff]
      %v1161 = vld [vmem:[%s1151 + $0x48] sm:$0xff]
      %v1162 = vld [vmem:[%s1151 + $0x50] sm:$0xff]
      %v1163 = vld [vmem:[%s1151 + $0x58] sm:$0xff]
      %v1164 = vld [vmem:[%s1151 + $0x60] sm:$0xff]
      %v1165 = vld [vmem:[%s1151 + $0x68] sm:$0xff]
      %v1166 = vld [vmem:[%s1151 + $0x70] sm:$0xff]
      %v1167 = vld [vmem:[%s1151 + $0x78] sm:$0xff]
      %v1171 = vrot.slane %v1132, 1
      %v1172 = vrot.slane %v1133, 1
      %v1173 = vsel %vm596, %v1171, %v1172
      %v1174 = vrot.slane %v1134, 1
      %v1175 = vsel %vm596, %v1172, %v1174
      %1178 = vmatprep.subr.mxu0 0.0
      %1179 = vmatpush1.msra.mxu0 %v1152
      %1180 = vmatprep.subr.mxu0 0.0
      %1181 = vmatpush1.msra.mxu0 %v1153
      %1182 = vmatprep.subr.mxu0 0.0
      %1183 = vmatpush1.msra.mxu0 %v1154
      %1184 = vmatprep.subr.mxu0 0.0
      %1185 = vmatpush1.msra.mxu0 %v1155
      %1186 = vmatprep.subr.mxu0 0.0
      %1187 = vmatpush1.msra.mxu0 %v1156
      %1188 = vmatprep.subr.mxu0 0.0
      %1189 = vmatpush1.msra.mxu0 %v1157
      %1190 = vmatprep.subr.mxu0 0.0
      %1191 = vmatpush1.msra.mxu0 %v1158
      %1192 = vmatprep.subr.mxu0 0.0
      %1193 = vmatpush1.msra.mxu0 %v1159
      %1194 = vmatprep.subr.mxu0 0.0
      %1195 = vmatpush1.msra.mxu0 %v1160
      %1196 = vmatprep.subr.mxu0 0.0
      %1197 = vmatpush1.msra.mxu0 %v1161
      %1198 = vmatprep.subr.mxu0 0.0
      %1199 = vmatpush1.msra.mxu0 %v1162
      %1200 = vmatprep.subr.mxu0 0.0
      %1201 = vmatpush1.msra.mxu0 %v1163
      %1202 = vmatprep.subr.mxu0 0.0
      %1203 = vmatpush1.msra.mxu0 %v1164
      %1204 = vmatprep.subr.mxu0 0.0
      %1205 = vmatpush1.msra.mxu0 %v1165
      %1206 = vmatprep.subr.mxu0 0.0
      %1207 = vmatpush1.msra.mxu0 %v1166
      %1208 = vmatprep.subr.mxu0 0.0
      %1209 = vmatpush1.msra.mxu0 %v1167
      %1210 = vmatprep.subr.mxu0 0.0
      %1211 = vmatpush1.msra.mxu0 0.0
      %1212 = vmatprep.subr.mxu0 0.0
      %1213 = vmatpush1.msra.mxu0 0.0
      %1214 = vmatprep.subr.mxu0 0.0
      %1215 = vmatpush1.msra.mxu0 0.0
      %1216 = vmatprep.subr.mxu0 0.0
      %1217 = vmatpush1.msra.mxu0 0.0
      %1218 = vmatprep.subr.mxu0 0.0
      %1219 = vmatpush1.msra.mxu0 0.0
      %1220 = vmatprep.subr.mxu0 0.0
      %1221 = vmatpush1.msra.mxu0 0.0
      %1222 = vmatprep.subr.mxu0 0.0
      %1223 = vmatpush1.msra.mxu0 0.0
      %1224 = vmatprep.subr.mxu0 0.0
      %1225 = vmatpush1.msra.mxu0 0.0
      %1226 = vmatprep.subr.mxu0 0.0
      %1227 = vmatpush1.msra.mxu0 0.0
      %1228 = vmatprep.subr.mxu0 0.0
      %1229 = vmatpush1.msra.mxu0 0.0
      %1230 = vmatprep.subr.mxu0 0.0
      %1231 = vmatpush1.msra.mxu0 0.0
      %1232 = vmatprep.subr.mxu0 0.0
      %1233 = vmatpush1.msra.mxu0 0.0
      %1234 = vmatprep.subr.mxu0 0.0
      %1235 = vmatpush1.msra.mxu0 0.0
      %1236 = vmatprep.subr.mxu0 0.0
      %1237 = vmatpush1.msra.mxu0 0.0
      %1238 = vmatprep.subr.mxu0 0.0
      %1239 = vmatpush1.msra.mxu0 0.0
      %1240 = vmatprep.subr.mxu0 0.0
      %1241 = vmatpush1.msra.mxu0 0.0
      %1242 = vmatprep.mubr.f32.mxu0 0.0
      %1243 = vmatmul.mubr.f32.gmra.mrb[0].mxu0 %v1173
      %v1244 = vpop.f32.mrb[0].mxu0
      %v1245 = vadd.f32 0.0, %v1244
      %v1246 = vpop.f32.mrb[0].mxu0
      %1247 = vmatprep.mubr.f32.mxu0 0.0
      %1248 = vmatmul.mubr.f32.gmra.mrb[0].mxu0 %v1175
      %v1249 = vpop.f32.mrb[0].mxu0
      %v1250 = vadd.f32 0.0, %v1249
      %v1251 = vpop.f32.mrb[0].mxu0
      %1252 = vdwg.mxu0
      %1253 = vmatprep.subr.mxu0 0.0
      %1254 = vmatpush1.msra.mxu0 %v1135
      %1255 = vmatprep.subr.mxu0 0.0
      %1256 = vmatpush1.msra.mxu0 %v1136
      %1257 = vmatprep.subr.mxu0 0.0
      %1258 = vmatpush1.msra.mxu0 %v1137
      %1259 = vmatprep.subr.mxu0 0.0
      %1260 = vmatpush1.msra.mxu0 %v1138
      %1261 = vmatprep.subr.mxu0 0.0
      %1262 = vmatpush1.msra.mxu0 %v1139
      %1263 = vmatprep.subr.mxu0 0.0
      %1264 = vmatpush1.msra.mxu0 %v1140
      %1265 = vmatprep.subr.mxu0 0.0
      %1266 = vmatpush1.msra.mxu0 %v1141
      %1267 = vmatprep.subr.mxu0 0.0
      %1268 = vmatpush1.msra.mxu0 %v1142
      %1269 = vmatprep.subr.mxu0 0.0
      %1270 = vmatpush1.msra.mxu0 %v1143
      %1271 = vmatprep.subr.mxu0 0.0
      %1272 = vmatpush1.msra.mxu0 %v1144
      %1273 = vmatprep.subr.mxu0 0.0
      %1274 = vmatpush1.msra.mxu0 %v1145
      %1275 = vmatprep.subr.mxu0 0.0
      %1276 = vmatpush1.msra.mxu0 %v1146
      %1277 = vmatprep.subr.mxu0 0.0
      %1278 = vmatpush1.msra.mxu0 %v1147
      %1279 = vmatprep.subr.mxu0 0.0
      %1280 = vmatpush1.msra.mxu0 %v1148
      %1281 = vmatprep.subr.mxu0 0.0
      %1282 = vmatpush1.msra.mxu0 %v1149
      %1283 = vmatprep.subr.mxu0 0.0
      %1284 = vmatpush1.msra.mxu0 %v1150
      %1285 = vmatprep.subr.mxu0 0.0
      %1286 = vmatpush1.msra.mxu0 0.0
      %1287 = vmatprep.subr.mxu0 0.0
      %1288 = vmatpush1.msra.mxu0 0.0
      %1289 = vmatprep.subr.mxu0 0.0
      %1290 = vmatpush1.msra.mxu0 0.0
      %1291 = vmatprep.subr.mxu0 0.0
      %1292 = vmatpush1.msra.mxu0 0.0
      %1293 = vmatprep.subr.mxu0 0.0
      %1294 = vmatpush1.msra.mxu0 0.0
      %1295 = vmatprep.subr.mxu0 0.0
      %1296 = vmatpush1.msra.mxu0 0.0
      %1297 = vmatprep.subr.mxu0 0.0
      %1298 = vmatpush1.msra.mxu0 0.0
      %1299 = vmatprep.subr.mxu0 0.0
      %1300 = vmatpush1.msra.mxu0 0.0
      %1301 = vmatprep.subr.mxu0 0.0
      %1302 = vmatpush1.msra.mxu0 0.0
      %1303 = vmatprep.subr.mxu0 0.0
      %1304 = vmatpush1.msra.mxu0 0.0
      %1305 = vmatprep.subr.mxu0 0.0
      %1306 = vmatpush1.msra.mxu0 0.0
      %1307 = vmatprep.subr.mxu0 0.0
      %1308 = vmatpush1.msra.mxu0 0.0
      %1309 = vmatprep.subr.mxu0 0.0
      %1310 = vmatpush1.msra.mxu0 0.0
      %1311 = vmatprep.subr.mxu0 0.0
      %1312 = vmatpush1.msra.mxu0 0.0
      %1313 = vmatprep.subr.mxu0 0.0
      %1314 = vmatpush1.msra.mxu0 0.0
      %1315 = vmatprep.subr.mxu0 0.0
      %1316 = vmatpush1.msra.mxu0 0.0
      %1317 = vmatprep.mubr.f32.mxu0 0.0
      %1318 = vmatmul.mubr.f32.gmra.mrb[0].mxu0 %v1132
      %v1319 = vpop.f32.mrb[0].mxu0
      %v1320 = vadd.f32 %v1245, %v1319
      %v1321 = vpop.f32.mrb[0].mxu0
      %1322 = vmatprep.mubr.f32.mxu0 0.0
      %1323 = vmatmul.mubr.f32.gmra.mrb[0].mxu0 %v1133
      %v1324 = vpop.f32.mrb[0].mxu0
      %v1325 = vadd.f32 %v1250, %v1324
      %v1326 = vpop.f32.mrb[0].mxu0
      %1327 = vdwg.mxu0
      %s1328 = scalar_lea.vmem %s9, 256
      %v1329 = vld [vmem:[%s1328] sm:$0xff]
      %v1330 = vld [vmem:[%s1328 + $0x8] sm:$0xff]
      %v1331 = vld [vmem:[%s1328 + $0x10] sm:$0xff]
      %v1332 = vld [vmem:[%s1328 + $0x18] sm:$0xff]
      %v1333 = vld [vmem:[%s1328 + $0x20] sm:$0xff]
      %v1334 = vld [vmem:[%s1328 + $0x28] sm:$0xff]
      %v1335 = vld [vmem:[%s1328 + $0x30] sm:$0xff]
      %v1336 = vld [vmem:[%s1328 + $0x38] sm:$0xff]
      %v1337 = vld [vmem:[%s1328 + $0x40] sm:$0xff]
      %v1338 = vld [vmem:[%s1328 + $0x48] sm:$0xff]
      %v1339 = vld [vmem:[%s1328 + $0x50] sm:$0xff]
      %v1340 = vld [vmem:[%s1328 + $0x58] sm:$0xff]
      %v1341 = vld [vmem:[%s1328 + $0x60] sm:$0xff]
      %v1342 = vld [vmem:[%s1328 + $0x68] sm:$0xff]
      %v1343 = vld [vmem:[%s1328 + $0x70] sm:$0xff]
      %v1344 = vld [vmem:[%s1328 + $0x78] sm:$0xff]
      %v1345 = vrot.slane %v1132, 2
      %v1346 = vrot.slane %v1133, 2
      %v1347 = vsel %vm782, %v1345, %v1346
      %v1348 = vrot.slane %v1134, 2
      %v1349 = vsel %vm782, %v1346, %v1348
      %1352 = vmatprep.subr.mxu0 0.0
      %1353 = vmatpush1.msra.mxu0 %v1329
      %1354 = vmatprep.subr.mxu0 0.0
      %1355 = vmatpush1.msra.mxu0 %v1330
      %1356 = vmatprep.subr.mxu0 0.0
      %1357 = vmatpush1.msra.mxu0 %v1331
      %1358 = vmatprep.subr.mxu0 0.0
      %1359 = vmatpush1.msra.mxu0 %v1332
      %1360 = vmatprep.subr.mxu0 0.0
      %1361 = vmatpush1.msra.mxu0 %v1333
      %1362 = vmatprep.subr.mxu0 0.0
      %1363 = vmatpush1.msra.mxu0 %v1334
      %1364 = vmatprep.subr.mxu0 0.0
      %1365 = vmatpush1.msra.mxu0 %v1335
      %1366 = vmatprep.subr.mxu0 0.0
      %1367 = vmatpush1.msra.mxu0 %v1336
      %1368 = vmatprep.subr.mxu0 0.0
      %1369 = vmatpush1.msra.mxu0 %v1337
      %1370 = vmatprep.subr.mxu0 0.0
      %1371 = vmatpush1.msra.mxu0 %v1338
      %1372 = vmatprep.subr.mxu0 0.0
      %1373 = vmatpush1.msra.mxu0 %v1339
      %1374 = vmatprep.subr.mxu0 0.0
      %1375 = vmatpush1.msra.mxu0 %v1340
      %1376 = vmatprep.subr.mxu0 0.0
      %1377 = vmatpush1.msra.mxu0 %v1341
      %1378 = vmatprep.subr.mxu0 0.0
      %1379 = vmatpush1.msra.mxu0 %v1342
      %1380 = vmatprep.subr.mxu0 0.0
      %1381 = vmatpush1.msra.mxu0 %v1343
      %1382 = vmatprep.subr.mxu0 0.0
      %1383 = vmatpush1.msra.mxu0 %v1344
      %1384 = vmatprep.subr.mxu0 0.0
      %1385 = vmatpush1.msra.mxu0 0.0
      %1386 = vmatprep.subr.mxu0 0.0
      %1387 = vmatpush1.msra.mxu0 0.0
      %1388 = vmatprep.subr.mxu0 0.0
      %1389 = vmatpush1.msra.mxu0 0.0
      %1390 = vmatprep.subr.mxu0 0.0
      %1391 = vmatpush1.msra.mxu0 0.0
      %1392 = vmatprep.subr.mxu0 0.0
      %1393 = vmatpush1.msra.mxu0 0.0
      %1394 = vmatprep.subr.mxu0 0.0
      %1395 = vmatpush1.msra.mxu0 0.0
      %1396 = vmatprep.subr.mxu0 0.0
      %1397 = vmatpush1.msra.mxu0 0.0
      %1398 = vmatprep.subr.mxu0 0.0
      %1399 = vmatpush1.msra.mxu0 0.0
      %1400 = vmatprep.subr.mxu0 0.0
      %1401 = vmatpush1.msra.mxu0 0.0
      %1402 = vmatprep.subr.mxu0 0.0
      %1403 = vmatpush1.msra.mxu0 0.0
      %1404 = vmatprep.subr.mxu0 0.0
      %1405 = vmatpush1.msra.mxu0 0.0
      %1406 = vmatprep.subr.mxu0 0.0
      %1407 = vmatpush1.msra.mxu0 0.0
      %1408 = vmatprep.subr.mxu0 0.0
      %1409 = vmatpush1.msra.mxu0 0.0
      %1410 = vmatprep.subr.mxu0 0.0
      %1411 = vmatpush1.msra.mxu0 0.0
      %1412 = vmatprep.subr.mxu0 0.0
      %1413 = vmatpush1.msra.mxu0 0.0
      %1414 = vmatprep.subr.mxu0 0.0
      %1415 = vmatpush1.msra.mxu0 0.0
      %1416 = vmatprep.mubr.f32.mxu0 0.0
      %1417 = vmatmul.mubr.f32.gmra.mrb[0].mxu0 %v1347
      %v1418 = vpop.f32.mrb[0].mxu0
      %v1419 = vadd.f32 0.0, %v1418
      %v1420 = vpop.f32.mrb[0].mxu0
      %1421 = vmatprep.mubr.f32.mxu0 0.0
      %1422 = vmatmul.mubr.f32.gmra.mrb[0].mxu0 %v1349
      %v1423 = vpop.f32.mrb[0].mxu0
      %v1424 = vadd.f32 0.0, %v1423
      %v1425 = vpop.f32.mrb[0].mxu0
      %1426 = vdwg.mxu0
      %v1427 = vadd.f32 %v1320, %v1419
      %v1428 = vadd.f32 %v1325, %v1424
      %v1429 = vld [vmem:[%s10] sm:$0x1]
      %v1431 = vlaneseq
      %v1432 = vshrl.u32 %v1431, 7
      %v1433 = vsub.s32 0, %v1432
      %v1434 = vrot.slane %v1429, %v1433
      %v1436 = vadd.f32 %v1427, %v1434
      %v1437 = vadd.f32 %v1428, %v1434
      %v1438 = vld [vmem:[%s11] sm:$0x1]
      %v1439 = vld [vmem:[%s12] sm:$0x1]
      %1440 = vadd.xlane.f32.xlu0 %v1436
      %v1441 = vpop.xlane.xlu0 %1440
      %1442 = vadd.xlane.f32.xlu0 %v1437
      %v1443 = vpop.xlane.xlu0 %1442
      %v1444 = vmul.f32 %v1441, 0.125
      %v1445 = vmul.f32 %v1443, 0.125
      %v1446 = vmul.f32 %v1436, %v1436
      %v1447 = vmul.f32 %v1437, %v1437
      %1448 = vadd.xlane.f32.xlu0 %v1446
      %v1449 = vpop.xlane.xlu0 %1448
      %1450 = vadd.xlane.f32.xlu0 %v1447
      %v1451 = vpop.xlane.xlu0 %1450
      %v1452 = vmul.f32 %v1449, 0.125
      %v1453 = vmul.f32 %v1451, 0.125
      %v1454 = vmul.f32 %v1444, %v1444
      %v1455 = vmul.f32 %v1445, %v1445
      %v1456 = vsub.f32 %v1452, %v1454
      %v1457 = vsub.f32 %v1453, %v1455
      %v1458 = vmax.f32 %v1456, 0.0
      %v1459 = vmax.f32 %v1457, 0.0
      %v1460 = vsub.f32 %v1436, %v1444
      %v1461 = vsub.f32 %v1437, %v1445
      %v1462 = vadd.f32 %v1458, 1e-05
      %v1463 = vadd.f32 %v1459, 1e-05
      %v1464 = vrsqrt.pop %v1462
      %v1465 = vrsqrt.pop %v1463
      %v1466 = vmul.f32 %v1460, %v1464
      %v1467 = vmul.f32 %v1461, %v1465
      %v1469 = vlaneseq
      %v1470 = vshrl.u32 %v1469, 7
      %v1471 = vsub.s32 0, %v1470
      %v1472 = vrot.slane %v1438, %v1471
      %v1474 = vmul.f32 %v1466, %v1472
      %v1475 = vmul.f32 %v1467, %v1472
      %v1477 = vlaneseq
      %v1478 = vshrl.u32 %v1477, 7
      %v1479 = vsub.s32 0, %v1478
      %v1480 = vrot.slane %v1439, %v1479
      %v1482 = vadd.f32 %v1474, %v1480
      %v1483 = vadd.f32 %v1475, %v1480
      %v1484 = vld [vmem:[%s13] sm:$0xff]
      %v1485 = vld [vmem:[%s13 + $0x8] sm:$0xff]
      %v1486 = vld [vmem:[%s13 + $0x10] sm:$0xff]
      %v1487 = vld [vmem:[%s13 + $0x18] sm:$0xff]
      %v1488 = vld [vmem:[%s13 + $0x20] sm:$0xff]
      %v1489 = vld [vmem:[%s13 + $0x28] sm:$0xff]
      %v1490 = vld [vmem:[%s13 + $0x30] sm:$0xff]
      %v1491 = vld [vmem:[%s13 + $0x38] sm:$0xff]
      %v1492 = vld [vmem:[%s13 + $0x40] sm:$0xff]
      %v1493 = vld [vmem:[%s13 + $0x48] sm:$0xff]
      %v1494 = vld [vmem:[%s13 + $0x50] sm:$0xff]
      %v1495 = vld [vmem:[%s13 + $0x58] sm:$0xff]
      %v1496 = vld [vmem:[%s13 + $0x60] sm:$0xff]
      %v1497 = vld [vmem:[%s13 + $0x68] sm:$0xff]
      %v1498 = vld [vmem:[%s13 + $0x70] sm:$0xff]
      %v1499 = vld [vmem:[%s13 + $0x78] sm:$0xff]
      %v1500 = vld [vmem:[%s14] sm:$0x1]
      %v1502 = vlaneseq
      %v1503 = vshrl.u32 %v1502, 7
      %v1504 = vsub.s32 0, %v1503
      %v1505 = vrot.slane %v1500, %v1504
      %1507 = vmatprep.subr.mxu0 0.0
      %1508 = vmatpush1.msra.mxu0 %v1484
      %1509 = vmatprep.subr.mxu0 0.0
      %1510 = vmatpush1.msra.mxu0 %v1485
      %1511 = vmatprep.subr.mxu0 0.0
      %1512 = vmatpush1.msra.mxu0 %v1486
      %1513 = vmatprep.subr.mxu0 0.0
      %1514 = vmatpush1.msra.mxu0 %v1487
      %1515 = vmatprep.subr.mxu0 0.0
      %1516 = vmatpush1.msra.mxu0 %v1488
      %1517 = vmatprep.subr.mxu0 0.0
      %1518 = vmatpush1.msra.mxu0 %v1489
      %1519 = vmatprep.subr.mxu0 0.0
      %1520 = vmatpush1.msra.mxu0 %v1490
      %1521 = vmatprep.subr.mxu0 0.0
      %1522 = vmatpush1.msra.mxu0 %v1491
      %1523 = vmatprep.subr.mxu0 0.0
      %1524 = vmatpush1.msra.mxu0 %v1492
      %1525 = vmatprep.subr.mxu0 0.0
      %1526 = vmatpush1.msra.mxu0 %v1493
      %1527 = vmatprep.subr.mxu0 0.0
      %1528 = vmatpush1.msra.mxu0 %v1494
      %1529 = vmatprep.subr.mxu0 0.0
      %1530 = vmatpush1.msra.mxu0 %v1495
      %1531 = vmatprep.subr.mxu0 0.0
      %1532 = vmatpush1.msra.mxu0 %v1496
      %1533 = vmatprep.subr.mxu0 0.0
      %1534 = vmatpush1.msra.mxu0 %v1497
      %1535 = vmatprep.subr.mxu0 0.0
      %1536 = vmatpush1.msra.mxu0 %v1498
      %1537 = vmatprep.subr.mxu0 0.0
      %1538 = vmatpush1.msra.mxu0 %v1499
      %1539 = vmatprep.subr.mxu0 0.0
      %1540 = vmatpush1.msra.mxu0 0.0
      %1541 = vmatprep.subr.mxu0 0.0
      %1542 = vmatpush1.msra.mxu0 0.0
      %1543 = vmatprep.subr.mxu0 0.0
      %1544 = vmatpush1.msra.mxu0 0.0
      %1545 = vmatprep.subr.mxu0 0.0
      %1546 = vmatpush1.msra.mxu0 0.0
      %1547 = vmatprep.subr.mxu0 0.0
      %1548 = vmatpush1.msra.mxu0 0.0
      %1549 = vmatprep.subr.mxu0 0.0
      %1550 = vmatpush1.msra.mxu0 0.0
      %1551 = vmatprep.subr.mxu0 0.0
      %1552 = vmatpush1.msra.mxu0 0.0
      %1553 = vmatprep.subr.mxu0 0.0
      %1554 = vmatpush1.msra.mxu0 0.0
      %1555 = vmatprep.subr.mxu0 0.0
      %1556 = vmatpush1.msra.mxu0 0.0
      %1557 = vmatprep.subr.mxu0 0.0
      %1558 = vmatpush1.msra.mxu0 0.0
      %1559 = vmatprep.subr.mxu0 0.0
      %1560 = vmatpush1.msra.mxu0 0.0
      %1561 = vmatprep.subr.mxu0 0.0
      %1562 = vmatpush1.msra.mxu0 0.0
      %1563 = vmatprep.subr.mxu0 0.0
      %1564 = vmatpush1.msra.mxu0 0.0
      %1565 = vmatprep.subr.mxu0 0.0
      %1566 = vmatpush1.msra.mxu0 0.0
      %1567 = vmatprep.subr.mxu0 0.0
      %1568 = vmatpush1.msra.mxu0 0.0
      %1569 = vmatprep.subr.mxu0 0.0
      %1570 = vmatpush1.msra.mxu0 0.0
      %1571 = vmatprep.mubr.f32.mxu0 0.0
      %1572 = vmatmul.mubr.f32.gmra.mrb[0].mxu0 %v1482
      %v1573 = vpop.f32.mrb[0].mxu0
      %v1574 = vadd.f32 %v1505, %v1573
      %v1575 = vpop.f32.mrb[0].mxu0
      %1576 = vmatprep.mubr.f32.mxu0 0.0
      %1577 = vmatmul.mubr.f32.gmra.mrb[0].mxu0 %v1483
      %v1578 = vpop.f32.mrb[0].mxu0
      %v1579 = vadd.f32 %v1505, %v1578
      %v1580 = vpop.f32.mrb[0].mxu0
      %1581 = vdwg.mxu0
      %v1582 = vld [vmem:[%s15] sm:$0x1]
      %v1583 = vld [vmem:[%s16] sm:$0x1]
      %1584 = vadd.xlane.f32.xlu0 %v1574
      %v1585 = vpop.xlane.xlu0 %1584
      %1586 = vadd.xlane.f32.xlu0 %v1579
      %v1587 = vpop.xlane.xlu0 %1586
      %v1588 = vmul.f32 %v1585, 0.125
      %v1589 = vmul.f32 %v1587, 0.125
      %v1590 = vmul.f32 %v1574, %v1574
      %v1591 = vmul.f32 %v1579, %v1579
      %1592 = vadd.xlane.f32.xlu0 %v1590
      %v1593 = vpop.xlane.xlu0 %1592
      %1594 = vadd.xlane.f32.xlu0 %v1591
      %v1595 = vpop.xlane.xlu0 %1594
      %v1596 = vmul.f32 %v1593, 0.125
      %v1597 = vmul.f32 %v1595, 0.125
      %v1598 = vmul.f32 %v1588, %v1588
      %v1599 = vmul.f32 %v1589, %v1589
      %v1600 = vsub.f32 %v1596, %v1598
      %v1601 = vsub.f32 %v1597, %v1599
      %v1602 = vmax.f32 %v1600, 0.0
      %v1603 = vmax.f32 %v1601, 0.0
      %v1604 = vsub.f32 %v1574, %v1588
      %v1605 = vsub.f32 %v1579, %v1589
      %v1606 = vadd.f32 %v1602, 1e-05
      %v1607 = vadd.f32 %v1603, 1e-05
      %v1608 = vrsqrt.pop %v1606
      %v1609 = vrsqrt.pop %v1607
      %v1610 = vmul.f32 %v1604, %v1608
      %v1611 = vmul.f32 %v1605, %v1609
      %v1613 = vlaneseq
      %v1614 = vshrl.u32 %v1613, 7
      %v1615 = vsub.s32 0, %v1614
      %v1616 = vrot.slane %v1582, %v1615
      %v1618 = vmul.f32 %v1610, %v1616
      %v1619 = vmul.f32 %v1611, %v1616
      %v1621 = vlaneseq
      %v1622 = vshrl.u32 %v1621, 7
      %v1623 = vsub.s32 0, %v1622
      %v1624 = vrot.slane %v1583, %v1623
      %v1626 = vadd.f32 %v1618, %v1624
      %v1627 = vadd.f32 %v1619, %v1624
      %1628 = vst [vmem:[%s548] sm:$0xff] %v1626
      %1629 = vst [vmem:[%s548 + $0x8] sm:$0xff] %v1627
      %p1630 = scmp.lt.s32.totalorder %s28, 1
      %s1631 = scalar_select %p1630, %s28, 1
      %s1632 = smul.addr %s1631, 2
      %s1633 = smul.addr %s1632, 8
      %s1634 = scalar_lea.vmem %s17, %s1633
      // Predicated region
      $region89: #{fused_mbconv1d_model.1} parent=87 // pred_check
        %p1635 = pneg %p408
      $region90: #{fused_mbconv1d_model.1} parent=87 // pred_check_branch
        %1637 = sbr.rel (%p1635) target = $region92
      $region91: #{fused_mbconv1d_model.1} parent=87 // pred_region
        _
      $region92: #{fused_mbconv1d_model.1} parent=87 // pred_fallthru
        _
    $region88: #{fused_mbconv1d_model.1} parent=5 // pred_fallthru
      _
    %p1638 = scmp.le.s32.totalorder 2, %s23
    // Predicated region
    $region93: #{fused_mbconv1d_model.1} parent=5 // pred_check
      %p1639 = pneg %p1638
    $region94: #{fused_mbconv1d_model.1} parent=5 // pred_check_branch
      %1641 = sbr.rel (%p1639) target = $region96
    $region95: #{fused_mbconv1d_model.1} parent=5 // pred_region
      %s1642 = ssub.s32 %s23, 2
      // Predicated region
      $region97: #{fused_mbconv1d_model.1} parent=95 // pred_check
        %p1643 = pneg %p414
      $region98: #{fused_mbconv1d_model.1} parent=95 // pred_check_branch
        %1645 = sbr.rel (%p1643) target = $region100
      $region99: #{fused_mbconv1d_model.1} parent=95 // pred_region
        %p1646 = scmp.lt.s32.totalorder %s29, 1
        %s1647 = scalar_select %p1646, %s29, 1
        %s1648 = smul.addr %s1647, 2
        %s1649 = smul.addr %s1648, 8
        %s1650 = scalar_lea.vmem %s17, %s1649
      $region100: #{fused_mbconv1d_model.1} parent=95 // pred_fallthru
        _
    $region96: #{fused_mbconv1d_model.1} parent=5 // pred_fallthru
      _
  $region6: #{fused_mbconv1d_model.1} parent=0 // loop_footer
    %s27 = sadd.s32 1, %s23
  $region7: #{fused_mbconv1d_model.1} parent=0 // loop_footer_branch
    %22 = sbr.rel target = $region3
  $region8: #{fused_mbconv1d_model.1} parent=0 // loop_exit
    _

</llo_original>
